<compile_context>
chip_gen: v5e
topology: v5e:2x2
jax: 0.10.0
libtpu: 0.0.40
codegen_flags: <defaults>
</compile_context>

<pallas_src>
import jax
import jax.numpy as jnp
from jax.experimental import pallas as pl
from jax.experimental.pallas import tpu as pltpu


# ------------------------------------------------------------------ kernel ---

def make_cginet_kernel(node_types, rt_s1, rt_s2, rel_type, n_nodes, e_pad):
    """Build the fused forward kernel, specialized to the static graph topology.

    Ref order (matches the wrapper):
      adj_s1[rt] (per rt_s1), adj_s2[rt] (per rt_s2), feat[t] (per node type),
      W_s1_l1[rt], W_s1_l2[rt], W_s2_l1[rt], W_s2_l2[rt],
      R_scaled, row_idx, col_idx, colneg_idx, out.
    """
    node_types = tuple(node_types)
    rt_s1 = tuple(rt_s1)
    rt_s2 = tuple(rt_s2)

    def kernel(*refs):
        it = iter(refs)
        adj1 = {rt: next(it)[...] for rt in rt_s1}
        adj2 = {rt: next(it)[...] for rt in rt_s2}
        feats = {t: next(it)[...] for t in node_types}
        w_s1l1 = {rt: next(it)[...] for rt in rt_s1}
        w_s1l2 = {rt: next(it)[...] for rt in rt_s1}
        w_s2l1 = {rt: next(it)[...] for rt in rt_s2}
        w_s2l2 = {rt: next(it)[...] for rt in rt_s2}
        r_scaled = next(it)[...]          # (H, H) = diag(d_k) @ R @ diag(d_k)
        row_idx = next(it)[...]           # (e_pad, 1) int32
        col_idx = next(it)[...]           # (e_pad, 1) int32
        colneg_idx = next(it)[...]        # (e_pad, 1) int32
        out_ref = next(it)                # (2, e_pad) f32

        def gcn_sum(adj_d, w_d, rts, inputs):
            # GraphConvolutionLayer: relu(adj @ (x @ W)) per relation (i, j),
            # summed over j into target node type i (dropout = 0.0 here).
            acc = {}
            for (i, j) in rts:
                xw = jnp.dot(inputs[j], w_d[(i, j)],
                             preferred_element_type=jnp.float32)
                h = jnp.maximum(
                    jnp.dot(adj_d[(i, j)], xw,
                            preferred_element_type=jnp.float32), 0.0)
                acc[i] = h if i not in acc else acc[i] + h
            return acc

        # --- GCNEncoder: 4 layers, all intermediates stay in VMEM ---
        h = gcn_sum(adj1, w_s1l1, rt_s1, feats)
        h = gcn_sum(adj1, w_s1l2, rt_s1, h)
        h = gcn_sum(adj2, w_s2l1, rt_s2, h)
        emb = gcn_sum(adj2, w_s2l2, rt_s2, h)

        emb_row = emb[rel_type[0]]
        emb_col = emb[rel_type[1]]

        def gather(idx_col, table, n):
            # In-kernel row gather as a one-hot MXU matmul (no XLA gather).
            lanes = jax.lax.broadcasted_iota(jnp.int32, (e_pad, n), 1)
            onehot = (idx_col == lanes).astype(jnp.float32)
            return jnp.dot(onehot, table, preferred_element_type=jnp.float32)

        er = gather(row_idx, emb_row, n_nodes[rel_type[0]])       # (e_pad, H)
        ec = gather(col_idx, emb_col, n_nodes[rel_type[1]])       # (e_pad, H)
        ecn = gather(colneg_idx, emb_col, n_nodes[rel_type[1]])   # (e_pad, H)

        # --- TDDecoder (DEDICOM), pos + neg fused; zr computed once ---
        zr = jnp.dot(er, r_scaled, preferred_element_type=jnp.float32)
        trans_b = (((1,), (1,)), ((), ()))            # zr @ ec^T (QK^T pattern)
        s_pos = jax.lax.dot_general(zr, ec, trans_b,
                                    preferred_element_type=jnp.float32)
        s_neg = jax.lax.dot_general(zr, ecn, trans_b,
                                    preferred_element_type=jnp.float32)

        # diag(.) extracted lane-major: identity mask + sublane reduce
        eye = (jax.lax.broadcasted_iota(jnp.int32, (e_pad, e_pad), 0)
               == jax.lax.broadcasted_iota(jnp.int32, (e_pad, e_pad), 1)
               ).astype(jnp.float32)
        out_ref[0:1, :] = jnp.sum(s_pos * eye, axis=0, keepdims=True)
        out_ref[1:2, :] = jnp.sum(s_neg * eye, axis=0, keepdims=True)

        # TODO(synk): at realistic graph sizes (v7x: 64 MiB VMEM, 2 TCs) this
        # should become a gridded kernel (node-row tiles, 128-wide K/N,
        # bf16 matmul inputs, dimension_semantics=("parallel", ...)).

    return kernel


# --------------------------------------------------------------- model glue --

def cginet_forward(params, dp, rel_type, rt_k, edges, neg_key, e_pad=128):
    node_types = sorted(dp["feat_dict"].keys())
    n_nodes = {t: dp["feat_dict"][t].shape[0] for t in node_types}
    rt_s1 = sorted(dp["rt_s1"].keys())
    rt_s2 = sorted(dp["rt_s2"].keys())

    edges = jnp.asarray(edges)
    e = edges.shape[0]
    e_pad = max(e_pad, -(-e // 128) * 128)          # pad edges to 128 lanes
    edges_row = edges[:, 0].astype(jnp.int32)
    edges_col = edges[:, 1].astype(jnp.int32)

    if dp["is_train"]:
        # TODO(synk): TF's fixed_unigram_candidate_sampler has no clean Pallas
        # equivalent; approximated by a distorted-unigram categorical draw.
        rel_trans = (rel_type[1], rel_type[0])
        deg = dp["deg_s2"][rel_trans][rt_k].astype(jnp.float32)
        p = deg ** dp["distortion"]
        p = p / jnp.sum(p)
        edges_col_neg = jax.random.choice(
            neg_key, deg.shape[0], shape=(e,), p=p).astype(jnp.int32)
    else:
        edges_col_neg = edges_col

    def pad_idx(v):
        return jnp.pad(v, (0, e_pad - e)).reshape(e_pad, 1).astype(jnp.int32)

    # Fold DEDICOM local factor into the global one once (D x D, trivial).
    d_k = params["dedicom"][rel_type]["local"][rt_k]
    r_scaled = params["dedicom"][rel_type]["global"] * jnp.outer(d_k, d_k)

    args = (
        [dp["adj_s1"][rt] for rt in rt_s1]
        + [dp["adj_s2"][rt] for rt in rt_s2]
        + [dp["feat_dict"][t] for t in node_types]
        + [params["s1_l1"][rt] for rt in rt_s1]
        + [params["s1_l2"][rt] for rt in rt_s1]
        + [params["s2_l1"][rt] for rt in rt_s2]
        + [params["s2_l2"][rt] for rt in rt_s2]
        + [r_scaled, pad_idx(edges_row), pad_idx(edges_col),
           pad_idx(edges_col_neg)]
    )

    kernel = make_cginet_kernel(node_types, rt_s1, rt_s2, rel_type,
                                n_nodes, e_pad)

    out = pl.pallas_call(
        kernel,
        out_shape=jax.ShapeDtypeStruct((2, e_pad), jnp.float32),
        in_specs=[pl.BlockSpec(memory_space=pltpu.MemorySpace.VMEM)] * len(args),
        out_specs=pl.BlockSpec(memory_space=pltpu.MemorySpace.VMEM),
    )(*args)

    preds_pos = out[0, :e]
    preds_neg = out[1, :e] if dp["is_train"] else None
    return preds_pos, preds_neg


# ------------------------------------------------------------------ builders --

def build_problem():
    key = jax.random.PRNGKey(0)
    ks = iter(jax.random.split(key, 64))

    N = {0: 16, 1: 24}                 # nodes per node type
    FEAT = {0: 40, 1: 48}              # raw feature dims
    HID = [32, 32, 32, 32]             # args.hid_dims
    RT_S1 = {(0, 0): 1, (0, 1): 1, (1, 0): 1, (1, 1): 1}
    RT_S2 = {(0, 1): 3, (1, 0): 3}

    def rnd(k, shape, scale=0.1):
        return scale * jax.random.normal(k, shape, dtype=jnp.float32)

    dp = {
        "rt_s1": RT_S1,
        "rt_s2": RT_S2,
        "feat_dict": {j: rnd(next(ks), (N[j], FEAT[j]), 1.0) for j in N},
        "adj_s1": {rt: (jax.random.uniform(next(ks), (N[rt[0]], N[rt[1]])) < 0.3
                        ).astype(jnp.float32) / N[rt[1]] for rt in RT_S1},
        "adj_s2": {rt: (jax.random.uniform(next(ks), (N[rt[0]], N[rt[1]])) < 0.3
                        ).astype(jnp.float32) / N[rt[1]] for rt in RT_S2},
        # degree of the row-node type of each s2 relation (length N[rt[0]])
        "deg_s2": {rt: jax.random.randint(next(ks), (RT_S2[rt], N[rt[0]]), 1, 10)
                   for rt in RT_S2},
        "is_train": True,
        "distortion": 0.75,
        "dropout": 0.0,
    }

    params = {
        "s1_l1": {rt: rnd(next(ks), (FEAT[rt[1]], HID[0])) for rt in RT_S1},
        "s1_l2": {rt: rnd(next(ks), (HID[0], HID[1])) for rt in RT_S1},
        "s2_l1": {rt: rnd(next(ks), (HID[1], HID[2])) for rt in RT_S2},
        "s2_l2": {rt: rnd(next(ks), (HID[2], HID[3])) for rt in RT_S2},
        "dedicom": {rt: {"global": rnd(next(ks), (HID[3], HID[3])),
                         "local": rnd(next(ks), (RT_S2[rt], HID[3]))}
                    for rt in RT_S2},
    }

    # edges for relation (0, 1): col 0 = row node idx (type 0), col 1 = col node idx (type 1)
    E = 8
    edges = jnp.stack([
        jax.random.randint(next(ks), (E,), 0, N[0]),
        jax.random.randint(next(ks), (E,), 0, N[1]),
    ], axis=1).astype(jnp.int32)

    neg_key = next(ks)
    return params, dp, edges, neg_key


if __name__ == "__main__":
    params, dp, edges, neg_key = build_problem()
    rel_type = (0, 1)
    rt_k = 1

    preds_pos, preds_neg = cginet_forward(params, dp, rel_type, rt_k, edges,
                                          neg_key)
    jax.block_until_ready(preds_pos)
    jax.block_until_ready(preds_neg)

    assert preds_pos.shape == (edges.shape[0],)
    assert preds_neg.shape == (edges.shape[0],)
    assert jnp.all(jnp.isfinite(preds_pos)) and jnp.all(jnp.isfinite(preds_neg))
    print("KERNEL_OK")
</pallas_src>

<mosaic_0001>
module attributes {stable_mosaic.version = 11 : i64} {
  func.func @kernel(%arg0: memref<16x16xf32, #tpu.memory_space<vmem>>, %arg1: memref<16x24xf32, #tpu.memory_space<vmem>>, %arg2: memref<24x16xf32, #tpu.memory_space<vmem>>, %arg3: memref<24x24xf32, #tpu.memory_space<vmem>>, %arg4: memref<16x24xf32, #tpu.memory_space<vmem>>, %arg5: memref<24x16xf32, #tpu.memory_space<vmem>>, %arg6: memref<16x40xf32, #tpu.memory_space<vmem>>, %arg7: memref<24x48xf32, #tpu.memory_space<vmem>>, %arg8: memref<40x32xf32, #tpu.memory_space<vmem>>, %arg9: memref<48x32xf32, #tpu.memory_space<vmem>>, %arg10: memref<40x32xf32, #tpu.memory_space<vmem>>, %arg11: memref<48x32xf32, #tpu.memory_space<vmem>>, %arg12: memref<32x32xf32, #tpu.memory_space<vmem>>, %arg13: memref<32x32xf32, #tpu.memory_space<vmem>>, %arg14: memref<32x32xf32, #tpu.memory_space<vmem>>, %arg15: memref<32x32xf32, #tpu.memory_space<vmem>>, %arg16: memref<32x32xf32, #tpu.memory_space<vmem>>, %arg17: memref<32x32xf32, #tpu.memory_space<vmem>>, %arg18: memref<32x32xf32, #tpu.memory_space<vmem>>, %arg19: memref<32x32xf32, #tpu.memory_space<vmem>>, %arg20: memref<32x32xf32, #tpu.memory_space<vmem>>, %arg21: memref<128x1xi32, #tpu.memory_space<vmem>>, %arg22: memref<128x1xi32, #tpu.memory_space<vmem>>, %arg23: memref<128x1xi32, #tpu.memory_space<vmem>>, %arg24: memref<2x128xf32, #tpu.memory_space<vmem>>) attributes {dimension_semantics = [], scalar_prefetch = 0 : i64, scratch_operands = 0 : i64, tpu.core_type = #tpu.core_type<tc>} {
    %c0 = arith.constant 0 : index
    %c0_0 = arith.constant 0 : index
    %0 = vector.load %arg0[%c0, %c0_0] : memref<16x16xf32, #tpu.memory_space<vmem>>, vector<16x16xf32>
    %c0_1 = arith.constant 0 : index
    %c0_2 = arith.constant 0 : index
    %1 = vector.load %arg1[%c0_1, %c0_2] : memref<16x24xf32, #tpu.memory_space<vmem>>, vector<16x24xf32>
    %c0_3 = arith.constant 0 : index
    %c0_4 = arith.constant 0 : index
    %2 = vector.load %arg2[%c0_3, %c0_4] : memref<24x16xf32, #tpu.memory_space<vmem>>, vector<24x16xf32>
    %c0_5 = arith.constant 0 : index
    %c0_6 = arith.constant 0 : index
    %3 = vector.load %arg3[%c0_5, %c0_6] : memref<24x24xf32, #tpu.memory_space<vmem>>, vector<24x24xf32>
    %c0_7 = arith.constant 0 : index
    %c0_8 = arith.constant 0 : index
    %4 = vector.load %arg4[%c0_7, %c0_8] : memref<16x24xf32, #tpu.memory_space<vmem>>, vector<16x24xf32>
    %c0_9 = arith.constant 0 : index
    %c0_10 = arith.constant 0 : index
    %5 = vector.load %arg5[%c0_9, %c0_10] : memref<24x16xf32, #tpu.memory_space<vmem>>, vector<24x16xf32>
    %c0_11 = arith.constant 0 : index
    %c0_12 = arith.constant 0 : index
    %6 = vector.load %arg6[%c0_11, %c0_12] : memref<16x40xf32, #tpu.memory_space<vmem>>, vector<16x40xf32>
    %c0_13 = arith.constant 0 : index
    %c0_14 = arith.constant 0 : index
    %7 = vector.load %arg7[%c0_13, %c0_14] : memref<24x48xf32, #tpu.memory_space<vmem>>, vector<24x48xf32>
    %c0_15 = arith.constant 0 : index
    %c0_16 = arith.constant 0 : index
    %8 = vector.load %arg8[%c0_15, %c0_16] : memref<40x32xf32, #tpu.memory_space<vmem>>, vector<40x32xf32>
    %c0_17 = arith.constant 0 : index
    %c0_18 = arith.constant 0 : index
    %9 = vector.load %arg9[%c0_17, %c0_18] : memref<48x32xf32, #tpu.memory_space<vmem>>, vector<48x32xf32>
    %c0_19 = arith.constant 0 : index
    %c0_20 = arith.constant 0 : index
    %10 = vector.load %arg10[%c0_19, %c0_20] : memref<40x32xf32, #tpu.memory_space<vmem>>, vector<40x32xf32>
    %c0_21 = arith.constant 0 : index
    %c0_22 = arith.constant 0 : index
    %11 = vector.load %arg11[%c0_21, %c0_22] : memref<48x32xf32, #tpu.memory_space<vmem>>, vector<48x32xf32>
    %c0_23 = arith.constant 0 : index
    %c0_24 = arith.constant 0 : index
    %12 = vector.load %arg12[%c0_23, %c0_24] : memref<32x32xf32, #tpu.memory_space<vmem>>, vector<32x32xf32>
    %c0_25 = arith.constant 0 : index
    %c0_26 = arith.constant 0 : index
    %13 = vector.load %arg13[%c0_25, %c0_26] : memref<32x32xf32, #tpu.memory_space<vmem>>, vector<32x32xf32>
    %c0_27 = arith.constant 0 : index
    %c0_28 = arith.constant 0 : index
    %14 = vector.load %arg14[%c0_27, %c0_28] : memref<32x32xf32, #tpu.memory_space<vmem>>, vector<32x32xf32>
    %c0_29 = arith.constant 0 : index
    %c0_30 = arith.constant 0 : index
    %15 = vector.load %arg15[%c0_29, %c0_30] : memref<32x32xf32, #tpu.memory_space<vmem>>, vector<32x32xf32>
    %c0_31 = arith.constant 0 : index
    %c0_32 = arith.constant 0 : index
    %16 = vector.load %arg16[%c0_31, %c0_32] : memref<32x32xf32, #tpu.memory_space<vmem>>, vector<32x32xf32>
    %c0_33 = arith.constant 0 : index
    %c0_34 = arith.constant 0 : index
    %17 = vector.load %arg17[%c0_33, %c0_34] : memref<32x32xf32, #tpu.memory_space<vmem>>, vector<32x32xf32>
    %c0_35 = arith.constant 0 : index
    %c0_36 = arith.constant 0 : index
    %18 = vector.load %arg18[%c0_35, %c0_36] : memref<32x32xf32, #tpu.memory_space<vmem>>, vector<32x32xf32>
    %c0_37 = arith.constant 0 : index
    %c0_38 = arith.constant 0 : index
    %19 = vector.load %arg19[%c0_37, %c0_38] : memref<32x32xf32, #tpu.memory_space<vmem>>, vector<32x32xf32>
    %c0_39 = arith.constant 0 : index
    %c0_40 = arith.constant 0 : index
    %20 = vector.load %arg20[%c0_39, %c0_40] : memref<32x32xf32, #tpu.memory_space<vmem>>, vector<32x32xf32>
    %c0_41 = arith.constant 0 : index
    %c0_42 = arith.constant 0 : index
    %21 = vector.load %arg21[%c0_41, %c0_42] : memref<128x1xi32, #tpu.memory_space<vmem>>, vector<128x1xi32>
    %c0_43 = arith.constant 0 : index
    %c0_44 = arith.constant 0 : index
    %22 = vector.load %arg22[%c0_43, %c0_44] : memref<128x1xi32, #tpu.memory_space<vmem>>, vector<128x1xi32>
    %c0_45 = arith.constant 0 : index
    %c0_46 = arith.constant 0 : index
    %23 = vector.load %arg23[%c0_45, %c0_46] : memref<128x1xi32, #tpu.memory_space<vmem>>, vector<128x1xi32>
    %cst = arith.constant dense<0.000000e+00> : vector<16x32xf32>
    %24 = tpu.matmul %6, %8, %cst {dimension_numbers = #tpu.dot_dimension_numbers<[1], [0], [0], [1], [0, 0, 1, 1], [], []>} : vector<16x40xf32>, vector<40x32xf32>, vector<16x32xf32> -> vector<16x32xf32>
    %cst_47 = arith.constant dense<0.000000e+00> : vector<16x32xf32>
    %25 = tpu.matmul %0, %24, %cst_47 {dimension_numbers = #tpu.dot_dimension_numbers<[1], [0], [0], [1], [0, 0, 1, 1], [], []>} : vector<16x16xf32>, vector<16x32xf32>, vector<16x32xf32> -> vector<16x32xf32>
    %cst_48 = arith.constant 0.000000e+00 : f32
    %26 = vector.broadcast %cst_48 : f32 to vector<16x32xf32>
    %27 = arith.maximumf %25, %26 : vector<16x32xf32>
    %cst_49 = arith.constant dense<0.000000e+00> : vector<24x32xf32>
    %28 = tpu.matmul %7, %9, %cst_49 {dimension_numbers = #tpu.dot_dimension_numbers<[1], [0], [0], [1], [0, 0, 1, 1], [], []>} : vector<24x48xf32>, vector<48x32xf32>, vector<24x32xf32> -> vector<24x32xf32>
    %cst_50 = arith.constant dense<0.000000e+00> : vector<16x32xf32>
    %29 = tpu.matmul %1, %28, %cst_50 {dimension_numbers = #tpu.dot_dimension_numbers<[1], [0], [0], [1], [0, 0, 1, 1], [], []>} : vector<16x24xf32>, vector<24x32xf32>, vector<16x32xf32> -> vector<16x32xf32>
    %cst_51 = arith.constant 0.000000e+00 : f32
    %30 = vector.broadcast %cst_51 : f32 to vector<16x32xf32>
    %31 = arith.maximumf %29, %30 : vector<16x32xf32>
    %32 = arith.addf %27, %31 : vector<16x32xf32>
    %cst_52 = arith.constant dense<0.000000e+00> : vector<16x32xf32>
    %33 = tpu.matmul %6, %10, %cst_52 {dimension_numbers = #tpu.dot_dimension_numbers<[1], [0], [0], [1], [0, 0, 1, 1], [], []>} : vector<16x40xf32>, vector<40x32xf32>, vector<16x32xf32> -> vector<16x32xf32>
    %cst_53 = arith.constant dense<0.000000e+00> : vector<24x32xf32>
    %34 = tpu.matmul %2, %33, %cst_53 {dimension_numbers = #tpu.dot_dimension_numbers<[1], [0], [0], [1], [0, 0, 1, 1], [], []>} : vector<24x16xf32>, vector<16x32xf32>, vector<24x32xf32> -> vector<24x32xf32>
    %cst_54 = arith.constant 0.000000e+00 : f32
    %35 = vector.broadcast %cst_54 : f32 to vector<24x32xf32>
    %36 = arith.maximumf %34, %35 : vector<24x32xf32>
    %cst_55 = arith.constant dense<0.000000e+00> : vector<24x32xf32>
    %37 = tpu.matmul %7, %11, %cst_55 {dimension_numbers = #tpu.dot_dimension_numbers<[1], [0], [0], [1], [0, 0, 1, 1], [], []>} : vector<24x48xf32>, vector<48x32xf32>, vector<24x32xf32> -> vector<24x32xf32>
    %cst_56 = arith.constant dense<0.000000e+00> : vector<24x32xf32>
    %38 = tpu.matmul %3, %37, %cst_56 {dimension_numbers = #tpu.dot_dimension_numbers<[1], [0], [0], [1], [0, 0, 1, 1], [], []>} : vector<24x24xf32>, vector<24x32xf32>, vector<24x32xf32> -> vector<24x32xf32>
    %cst_57 = arith.constant 0.000000e+00 : f32
    %39 = vector.broadcast %cst_57 : f32 to vector<24x32xf32>
    %40 = arith.maximumf %38, %39 : vector<24x32xf32>
    %41 = arith.addf %36, %40 : vector<24x32xf32>
    %cst_58 = arith.constant dense<0.000000e+00> : vector<16x32xf32>
    %42 = tpu.matmul %32, %12, %cst_58 {dimension_numbers = #tpu.dot_dimension_numbers<[1], [0], [0], [1], [0, 0, 1, 1], [], []>} : vector<16x32xf32>, vector<32x32xf32>, vector<16x32xf32> -> vector<16x32xf32>
    %cst_59 = arith.constant dense<0.000000e+00> : vector<16x32xf32>
    %43 = tpu.matmul %0, %42, %cst_59 {dimension_numbers = #tpu.dot_dimension_numbers<[1], [0], [0], [1], [0, 0, 1, 1], [], []>} : vector<16x16xf32>, vector<16x32xf32>, vector<16x32xf32> -> vector<16x32xf32>
    %cst_60 = arith.constant 0.000000e+00 : f32
    %44 = vector.broadcast %cst_60 : f32 to vector<16x32xf32>
    %45 = arith.maximumf %43, %44 : vector<16x32xf32>
    %cst_61 = arith.constant dense<0.000000e+00> : vector<24x32xf32>
    %46 = tpu.matmul %41, %13, %cst_61 {dimension_numbers = #tpu.dot_dimension_numbers<[1], [0], [0], [1], [0, 0, 1, 1], [], []>} : vector<24x32xf32>, vector<32x32xf32>, vector<24x32xf32> -> vector<24x32xf32>
    %cst_62 = arith.constant dense<0.000000e+00> : vector<16x32xf32>
    %47 = tpu.matmul %1, %46, %cst_62 {dimension_numbers = #tpu.dot_dimension_numbers<[1], [0], [0], [1], [0, 0, 1, 1], [], []>} : vector<16x24xf32>, vector<24x32xf32>, vector<16x32xf32> -> vector<16x32xf32>
    %cst_63 = arith.constant 0.000000e+00 : f32
    %48 = vector.broadcast %cst_63 : f32 to vector<16x32xf32>
    %49 = arith.maximumf %47, %48 : vector<16x32xf32>
    %50 = arith.addf %45, %49 : vector<16x32xf32>
    %cst_64 = arith.constant dense<0.000000e+00> : vector<16x32xf32>
    %51 = tpu.matmul %32, %14, %cst_64 {dimension_numbers = #tpu.dot_dimension_numbers<[1], [0], [0], [1], [0, 0, 1, 1], [], []>} : vector<16x32xf32>, vector<32x32xf32>, vector<16x32xf32> -> vector<16x32xf32>
    %cst_65 = arith.constant dense<0.000000e+00> : vector<24x32xf32>
    %52 = tpu.matmul %2, %51, %cst_65 {dimension_numbers = #tpu.dot_dimension_numbers<[1], [0], [0], [1], [0, 0, 1, 1], [], []>} : vector<24x16xf32>, vector<16x32xf32>, vector<24x32xf32> -> vector<24x32xf32>
    %cst_66 = arith.constant 0.000000e+00 : f32
    %53 = vector.broadcast %cst_66 : f32 to vector<24x32xf32>
    %54 = arith.maximumf %52, %53 : vector<24x32xf32>
    %cst_67 = arith.constant dense<0.000000e+00> : vector<24x32xf32>
    %55 = tpu.matmul %41, %15, %cst_67 {dimension_numbers = #tpu.dot_dimension_numbers<[1], [0], [0], [1], [0, 0, 1, 1], [], []>} : vector<24x32xf32>, vector<32x32xf32>, vector<24x32xf32> -> vector<24x32xf32>
    %cst_68 = arith.constant dense<0.000000e+00> : vector<24x32xf32>
    %56 = tpu.matmul %3, %55, %cst_68 {dimension_numbers = #tpu.dot_dimension_numbers<[1], [0], [0], [1], [0, 0, 1, 1], [], []>} : vector<24x24xf32>, vector<24x32xf32>, vector<24x32xf32> -> vector<24x32xf32>
    %cst_69 = arith.constant 0.000000e+00 : f32
    %57 = vector.broadcast %cst_69 : f32 to vector<24x32xf32>
    %58 = arith.maximumf %56, %57 : vector<24x32xf32>
    %59 = arith.addf %54, %58 : vector<24x32xf32>
    %cst_70 = arith.constant dense<0.000000e+00> : vector<24x32xf32>
    %60 = tpu.matmul %59, %16, %cst_70 {dimension_numbers = #tpu.dot_dimension_numbers<[1], [0], [0], [1], [0, 0, 1, 1], [], []>} : vector<24x32xf32>, vector<32x32xf32>, vector<24x32xf32> -> vector<24x32xf32>
    %cst_71 = arith.constant dense<0.000000e+00> : vector<16x32xf32>
    %61 = tpu.matmul %4, %60, %cst_71 {dimension_numbers = #tpu.dot_dimension_numbers<[1], [0], [0], [1], [0, 0, 1, 1], [], []>} : vector<16x24xf32>, vector<24x32xf32>, vector<16x32xf32> -> vector<16x32xf32>
    %cst_72 = arith.constant 0.000000e+00 : f32
    %62 = vector.broadcast %cst_72 : f32 to vector<16x32xf32>
    %63 = arith.maximumf %61, %62 : vector<16x32xf32>
    %cst_73 = arith.constant dense<0.000000e+00> : vector<16x32xf32>
    %64 = tpu.matmul %50, %17, %cst_73 {dimension_numbers = #tpu.dot_dimension_numbers<[1], [0], [0], [1], [0, 0, 1, 1], [], []>} : vector<16x32xf32>, vector<32x32xf32>, vector<16x32xf32> -> vector<16x32xf32>
    %cst_74 = arith.constant dense<0.000000e+00> : vector<24x32xf32>
    %65 = tpu.matmul %5, %64, %cst_74 {dimension_numbers = #tpu.dot_dimension_numbers<[1], [0], [0], [1], [0, 0, 1, 1], [], []>} : vector<24x16xf32>, vector<16x32xf32>, vector<24x32xf32> -> vector<24x32xf32>
    %cst_75 = arith.constant 0.000000e+00 : f32
    %66 = vector.broadcast %cst_75 : f32 to vector<24x32xf32>
    %67 = arith.maximumf %65, %66 : vector<24x32xf32>
    %cst_76 = arith.constant dense<0.000000e+00> : vector<24x32xf32>
    %68 = tpu.matmul %67, %18, %cst_76 {dimension_numbers = #tpu.dot_dimension_numbers<[1], [0], [0], [1], [0, 0, 1, 1], [], []>} : vector<24x32xf32>, vector<32x32xf32>, vector<24x32xf32> -> vector<24x32xf32>
    %cst_77 = arith.constant dense<0.000000e+00> : vector<16x32xf32>
    %69 = tpu.matmul %4, %68, %cst_77 {dimension_numbers = #tpu.dot_dimension_numbers<[1], [0], [0], [1], [0, 0, 1, 1], [], []>} : vector<16x24xf32>, vector<24x32xf32>, vector<16x32xf32> -> vector<16x32xf32>
    %cst_78 = arith.constant 0.000000e+00 : f32
    %70 = vector.broadcast %cst_78 : f32 to vector<16x32xf32>
    %71 = arith.maximumf %69, %70 : vector<16x32xf32>
    %cst_79 = arith.constant dense<0.000000e+00> : vector<16x32xf32>
    %72 = tpu.matmul %63, %19, %cst_79 {dimension_numbers = #tpu.dot_dimension_numbers<[1], [0], [0], [1], [0, 0, 1, 1], [], []>} : vector<16x32xf32>, vector<32x32xf32>, vector<16x32xf32> -> vector<16x32xf32>
    %cst_80 = arith.constant dense<0.000000e+00> : vector<24x32xf32>
    %73 = tpu.matmul %5, %72, %cst_80 {dimension_numbers = #tpu.dot_dimension_numbers<[1], [0], [0], [1], [0, 0, 1, 1], [], []>} : vector<24x16xf32>, vector<16x32xf32>, vector<24x32xf32> -> vector<24x32xf32>
    %cst_81 = arith.constant 0.000000e+00 : f32
    %74 = vector.broadcast %cst_81 : f32 to vector<24x32xf32>
    %75 = arith.maximumf %73, %74 : vector<24x32xf32>
    %76 = tpu.iota {dimensions = array<i32: 1>} : vector<128x16xi32>
    %77 = vector.broadcast %21 : vector<128x1xi32> to vector<128x16xi32>
    %78 = arith.cmpi eq, %77, %76 : vector<128x16xi32>
    %79 = arith.extui %78 : vector<128x16xi1> to vector<128x16xi32>
    %80 = arith.sitofp %79 : vector<128x16xi32> to vector<128x16xf32>
    %cst_82 = arith.constant dense<0.000000e+00> : vector<128x32xf32>
    %81 = tpu.matmul %80, %71, %cst_82 {dimension_numbers = #tpu.dot_dimension_numbers<[1], [0], [0], [1], [0, 0, 1, 1], [], []>} : vector<128x16xf32>, vector<16x32xf32>, vector<128x32xf32> -> vector<128x32xf32>
    %82 = tpu.iota {dimensions = array<i32: 1>} : vector<128x24xi32>
    %83 = vector.broadcast %22 : vector<128x1xi32> to vector<128x24xi32>
    %84 = arith.cmpi eq, %83, %82 : vector<128x24xi32>
    %85 = arith.extui %84 : vector<128x24xi1> to vector<128x24xi32>
    %86 = arith.sitofp %85 : vector<128x24xi32> to vector<128x24xf32>
    %cst_83 = arith.constant dense<0.000000e+00> : vector<128x32xf32>
    %87 = tpu.matmul %86, %75, %cst_83 {dimension_numbers = #tpu.dot_dimension_numbers<[1], [0], [0], [1], [0, 0, 1, 1], [], []>} : vector<128x24xf32>, vector<24x32xf32>, vector<128x32xf32> -> vector<128x32xf32>
    %88 = tpu.iota {dimensions = array<i32: 1>} : vector<128x24xi32>
    %89 = vector.broadcast %23 : vector<128x1xi32> to vector<128x24xi32>
    %90 = arith.cmpi eq, %89, %88 : vector<128x24xi32>
    %91 = arith.extui %90 : vector<128x24xi1> to vector<128x24xi32>
    %92 = arith.sitofp %91 : vector<128x24xi32> to vector<128x24xf32>
    %cst_84 = arith.constant dense<0.000000e+00> : vector<128x32xf32>
    %93 = tpu.matmul %92, %75, %cst_84 {dimension_numbers = #tpu.dot_dimension_numbers<[1], [0], [0], [1], [0, 0, 1, 1], [], []>} : vector<128x24xf32>, vector<24x32xf32>, vector<128x32xf32> -> vector<128x32xf32>
    %cst_85 = arith.constant dense<0.000000e+00> : vector<128x32xf32>
    %94 = tpu.matmul %81, %20, %cst_85 {dimension_numbers = #tpu.dot_dimension_numbers<[1], [0], [0], [1], [0, 0, 1, 1], [], []>} : vector<128x32xf32>, vector<32x32xf32>, vector<128x32xf32> -> vector<128x32xf32>
    %cst_86 = arith.constant dense<0.000000e+00> : vector<128x128xf32>
    %95 = tpu.matmul %94, %87, %cst_86 {dimension_numbers = #tpu.dot_dimension_numbers<[1], [1], [0], [0], [0, 0, 1, 0], [], []>} : vector<128x32xf32>, vector<128x32xf32>, vector<128x128xf32> -> vector<128x128xf32>
    %cst_87 = arith.constant dense<0.000000e+00> : vector<128x128xf32>
    %96 = tpu.matmul %94, %93, %cst_87 {dimension_numbers = #tpu.dot_dimension_numbers<[1], [1], [0], [0], [0, 0, 1, 0], [], []>} : vector<128x32xf32>, vector<128x32xf32>, vector<128x128xf32> -> vector<128x128xf32>
    %97 = tpu.iota {dimensions = array<i32: 0>} : vector<128x128xi32>
    %98 = tpu.iota {dimensions = array<i32: 1>} : vector<128x128xi32>
    %99 = arith.cmpi eq, %97, %98 : vector<128x128xi32>
    %100 = arith.extui %99 : vector<128x128xi1> to vector<128x128xi32>
    %101 = arith.sitofp %100 : vector<128x128xi32> to vector<128x128xf32>
    %102 = arith.mulf %95, %101 : vector<128x128xf32>
    %cst_88 = arith.constant dense<0.000000e+00> : vector<128xf32>
    %103 = vector.multi_reduction <add>, %102, %cst_88 [0] : vector<128x128xf32> to vector<128xf32>
    %104 = vector.shape_cast %103 : vector<128xf32> to vector<1x128xf32>
    %c0_89 = arith.constant 0 : index
    %c0_90 = arith.constant 0 : index
    %105 = vector.load %arg24[%c0_89, %c0_90] : memref<2x128xf32, #tpu.memory_space<vmem>>, vector<1x128xf32>
    tpu.vector_store %arg24[%c0_89, %c0_90], %104 {strides = array<i32>} : memref<2x128xf32, #tpu.memory_space<vmem>>, vector<1x128xf32>,
    %106 = arith.mulf %96, %101 : vector<128x128xf32>
    %cst_91 = arith.constant dense<0.000000e+00> : vector<128xf32>
    %107 = vector.multi_reduction <add>, %106, %cst_91 [0] : vector<128x128xf32> to vector<128xf32>
    %108 = vector.shape_cast %107 : vector<128xf32> to vector<1x128xf32>
    %c1 = arith.constant 1 : index
    %c0_92 = arith.constant 0 : index
    %109 = vector.load %arg24[%c1, %c0_92] : memref<2x128xf32, #tpu.memory_space<vmem>>, vector<1x128xf32>
    tpu.vector_store %arg24[%c1, %c0_92], %108 {strides = array<i32>} : memref<2x128xf32, #tpu.memory_space<vmem>>, vector<1x128xf32>,
    return
  }
}

</mosaic_0001>

<llo_original>
// kernel: tpu_custom_call.1
$region0: #{tpu_custom_call.1}
  #allocation0 [shape = 'u32[]', space=smem, size = 0x4, offset = 0x4, fixed_abs, tag = 'smem constant byte address 0x4 - core index']
  #allocation1 [shape = 'u32[72,128]{1,0:T(1,128)}', space=vmem, size = 0x9000, scoped, tag = 'internal scratch']
  %s0 = inlined_call_operand.vmem [shape: f32[16,16], index: 0, kind: input, shape index: {}]
  %s1 = inlined_call_operand.vmem [shape: f32[16,24], index: 1, kind: input, shape index: {}]
  %s2 = inlined_call_operand.vmem [shape: f32[24,16], index: 2, kind: input, shape index: {}]
  %s3 = inlined_call_operand.vmem [shape: f32[24,24], index: 3, kind: input, shape index: {}]
  %s4 = inlined_call_operand.vmem [shape: f32[16,24], index: 4, kind: input, shape index: {}]
  %s5 = inlined_call_operand.vmem [shape: f32[24,16], index: 5, kind: input, shape index: {}]
  %s6 = inlined_call_operand.vmem [shape: f32[16,40], index: 6, kind: input, shape index: {}]
  %s7 = inlined_call_operand.vmem [shape: f32[24,48], index: 7, kind: input, shape index: {}]
  %s8 = inlined_call_operand.vmem [shape: f32[40,32], index: 8, kind: input, shape index: {}]
  %s9 = inlined_call_operand.vmem [shape: f32[48,32], index: 9, kind: input, shape index: {}]
  %s10 = inlined_call_operand.vmem [shape: f32[40,32], index: 10, kind: input, shape index: {}]
  %s11 = inlined_call_operand.vmem [shape: f32[48,32], index: 11, kind: input, shape index: {}]
  %s12 = inlined_call_operand.vmem [shape: f32[32,32], index: 12, kind: input, shape index: {}]
  %s13 = inlined_call_operand.vmem [shape: f32[32,32], index: 13, kind: input, shape index: {}]
  %s14 = inlined_call_operand.vmem [shape: f32[32,32], index: 14, kind: input, shape index: {}]
  %s15 = inlined_call_operand.vmem [shape: f32[32,32], index: 15, kind: input, shape index: {}]
  %s16 = inlined_call_operand.vmem [shape: f32[32,32], index: 16, kind: input, shape index: {}]
  %s17 = inlined_call_operand.vmem [shape: f32[32,32], index: 17, kind: input, shape index: {}]
  %s18 = inlined_call_operand.vmem [shape: f32[32,32], index: 18, kind: input, shape index: {}]
  %s19 = inlined_call_operand.vmem [shape: f32[32,32], index: 19, kind: input, shape index: {}]
  %s20 = inlined_call_operand.vmem [shape: f32[32,32], index: 20, kind: input, shape index: {}]
  %s21 = inlined_call_operand.vmem [shape: s32[128,1], index: 21, kind: input, shape index: {}]
  %s22 = inlined_call_operand.vmem [shape: s32[128,1], index: 22, kind: input, shape index: {}]
  %s23 = inlined_call_operand.vmem [shape: s32[128,1], index: 23, kind: input, shape index: {}]
  %s24 = inlined_call_operand.hbm [shape: f32[2,128], index: 24, kind: output, shape index: {}]
  %s25 = sld [smem:[#allocation0]]
  $region106: #{tpu_custom_call.1} parent=0
    _
  %s27 = ssub.s32 1, %s25
  %s28 = scalar_select 0, %s27, %s25
  $region1: #{tpu_custom_call.1} parent=0
    #allocation2 [shape = 'u8[1024]{0}', space=vmem, size = 0x400, scoped, tag = 'output window, operand 0, single buffered']
    #allocation3 [shape = 's32[1]{0}', space=sflag, size = 0x4, scoped, tag = 'scoped memory for tpu_custom_call.1']
    %29 = vsyncpa [#allocation3], 0
    // Predicated region
    $region2: #{tpu_custom_call.1} parent=1 // pred_check
      _
    $region3: #{tpu_custom_call.1} parent=1 // pred_check_branch
      %31 = sbr.rel (0) target = $region5
    $region4: #{tpu_custom_call.1} parent=1 // pred_region
      _
    $region5: #{tpu_custom_call.1} parent=1 // pred_fallthru
      _
    // Predicated region
    $region6: #{tpu_custom_call.1} parent=1 // pred_check
      _
    $region7: #{tpu_custom_call.1} parent=1 // pred_check_branch
      %33 = sbr.rel (0) target = $region9
    $region8: #{tpu_custom_call.1} parent=1 // pred_region
      _
    $region9: #{tpu_custom_call.1} parent=1 // pred_fallthru
      _
    // Predicated region
    $region10: #{tpu_custom_call.1} parent=1 // pred_check
      _
    $region11: #{tpu_custom_call.1} parent=1 // pred_check_branch
      %35 = sbr.rel (0) target = $region13
    $region12: #{tpu_custom_call.1} parent=1 // pred_region
      _
    $region13: #{tpu_custom_call.1} parent=1 // pred_fallthru
      _
    // Predicated region
    $region14: #{tpu_custom_call.1} parent=1 // pred_check
      _
    $region15: #{tpu_custom_call.1} parent=1 // pred_check_branch
      %37 = sbr.rel (0) target = $region17
    $region16: #{tpu_custom_call.1} parent=1 // pred_region
      _
    $region17: #{tpu_custom_call.1} parent=1 // pred_fallthru
      _
    // Predicated region
    $region18: #{tpu_custom_call.1} parent=1 // pred_check
      _
    $region19: #{tpu_custom_call.1} parent=1 // pred_check_branch
      %39 = sbr.rel (0) target = $region21
    $region20: #{tpu_custom_call.1} parent=1 // pred_region
      _
    $region21: #{tpu_custom_call.1} parent=1 // pred_fallthru
      _
    // Predicated region
    $region22: #{tpu_custom_call.1} parent=1 // pred_check
      _
    $region23: #{tpu_custom_call.1} parent=1 // pred_check_branch
      %41 = sbr.rel (0) target = $region25
    $region24: #{tpu_custom_call.1} parent=1 // pred_region
      _
    $region25: #{tpu_custom_call.1} parent=1 // pred_fallthru
      _
    // Predicated region
    $region26: #{tpu_custom_call.1} parent=1 // pred_check
      _
    $region27: #{tpu_custom_call.1} parent=1 // pred_check_branch
      %43 = sbr.rel (0) target = $region29
    $region28: #{tpu_custom_call.1} parent=1 // pred_region
      _
    $region29: #{tpu_custom_call.1} parent=1 // pred_fallthru
      _
    // Predicated region
    $region30: #{tpu_custom_call.1} parent=1 // pred_check
      _
    $region31: #{tpu_custom_call.1} parent=1 // pred_check_branch
      %45 = sbr.rel (0) target = $region33
    $region32: #{tpu_custom_call.1} parent=1 // pred_region
      _
    $region33: #{tpu_custom_call.1} parent=1 // pred_fallthru
      _
    // Predicated region
    $region34: #{tpu_custom_call.1} parent=1 // pred_check
      _
    $region35: #{tpu_custom_call.1} parent=1 // pred_check_branch
      %47 = sbr.rel (0) target = $region37
    $region36: #{tpu_custom_call.1} parent=1 // pred_region
      _
    $region37: #{tpu_custom_call.1} parent=1 // pred_fallthru
      _
    // Predicated region
    $region38: #{tpu_custom_call.1} parent=1 // pred_check
      _
    $region39: #{tpu_custom_call.1} parent=1 // pred_check_branch
      %49 = sbr.rel (0) target = $region41
    $region40: #{tpu_custom_call.1} parent=1 // pred_region
      _
    $region41: #{tpu_custom_call.1} parent=1 // pred_fallthru
      _
    // Predicated region
    $region42: #{tpu_custom_call.1} parent=1 // pred_check
      _
    $region43: #{tpu_custom_call.1} parent=1 // pred_check_branch
      %51 = sbr.rel (0) target = $region45
    $region44: #{tpu_custom_call.1} parent=1 // pred_region
      _
    $region45: #{tpu_custom_call.1} parent=1 // pred_fallthru
      _
    // Predicated region
    $region46: #{tpu_custom_call.1} parent=1 // pred_check
      _
    $region47: #{tpu_custom_call.1} parent=1 // pred_check_branch
      %53 = sbr.rel (0) target = $region49
    $region48: #{tpu_custom_call.1} parent=1 // pred_region
      _
    $region49: #{tpu_custom_call.1} parent=1 // pred_fallthru
      _
    // Predicated region
    $region50: #{tpu_custom_call.1} parent=1 // pred_check
      _
    $region51: #{tpu_custom_call.1} parent=1 // pred_check_branch
      %55 = sbr.rel (0) target = $region53
    $region52: #{tpu_custom_call.1} parent=1 // pred_region
      _
    $region53: #{tpu_custom_call.1} parent=1 // pred_fallthru
      _
    // Predicated region
    $region54: #{tpu_custom_call.1} parent=1 // pred_check
      _
    $region55: #{tpu_custom_call.1} parent=1 // pred_check_branch
      %57 = sbr.rel (0) target = $region57
    $region56: #{tpu_custom_call.1} parent=1 // pred_region
      _
    $region57: #{tpu_custom_call.1} parent=1 // pred_fallthru
      _
    // Predicated region
    $region58: #{tpu_custom_call.1} parent=1 // pred_check
      _
    $region59: #{tpu_custom_call.1} parent=1 // pred_check_branch
      %59 = sbr.rel (0) target = $region61
    $region60: #{tpu_custom_call.1} parent=1 // pred_region
      _
    $region61: #{tpu_custom_call.1} parent=1 // pred_fallthru
      _
    // Predicated region
    $region62: #{tpu_custom_call.1} parent=1 // pred_check
      _
    $region63: #{tpu_custom_call.1} parent=1 // pred_check_branch
      %61 = sbr.rel (0) target = $region65
    $region64: #{tpu_custom_call.1} parent=1 // pred_region
      _
    $region65: #{tpu_custom_call.1} parent=1 // pred_fallthru
      _
    // Predicated region
    $region66: #{tpu_custom_call.1} parent=1 // pred_check
      _
    $region67: #{tpu_custom_call.1} parent=1 // pred_check_branch
      %63 = sbr.rel (0) target = $region69
    $region68: #{tpu_custom_call.1} parent=1 // pred_region
      _
    $region69: #{tpu_custom_call.1} parent=1 // pred_fallthru
      _
    // Predicated region
    $region70: #{tpu_custom_call.1} parent=1 // pred_check
      _
    $region71: #{tpu_custom_call.1} parent=1 // pred_check_branch
      %65 = sbr.rel (0) target = $region73
    $region72: #{tpu_custom_call.1} parent=1 // pred_region
      _
    $region73: #{tpu_custom_call.1} parent=1 // pred_fallthru
      _
    // Predicated region
    $region74: #{tpu_custom_call.1} parent=1 // pred_check
      _
    $region75: #{tpu_custom_call.1} parent=1 // pred_check_branch
      %67 = sbr.rel (0) target = $region77
    $region76: #{tpu_custom_call.1} parent=1 // pred_region
      _
    $region77: #{tpu_custom_call.1} parent=1 // pred_fallthru
      _
    // Predicated region
    $region78: #{tpu_custom_call.1} parent=1 // pred_check
      _
    $region79: #{tpu_custom_call.1} parent=1 // pred_check_branch
      %69 = sbr.rel (0) target = $region81
    $region80: #{tpu_custom_call.1} parent=1 // pred_region
      _
    $region81: #{tpu_custom_call.1} parent=1 // pred_fallthru
      _
    // Predicated region
    $region82: #{tpu_custom_call.1} parent=1 // pred_check
      _
    $region83: #{tpu_custom_call.1} parent=1 // pred_check_branch
      %71 = sbr.rel (0) target = $region85
    $region84: #{tpu_custom_call.1} parent=1 // pred_region
      _
    $region85: #{tpu_custom_call.1} parent=1 // pred_fallthru
      _
    // Predicated region
    $region86: #{tpu_custom_call.1} parent=1 // pred_check
      _
    $region87: #{tpu_custom_call.1} parent=1 // pred_check_branch
      %73 = sbr.rel (0) target = $region89
    $region88: #{tpu_custom_call.1} parent=1 // pred_region
      _
    $region89: #{tpu_custom_call.1} parent=1 // pred_fallthru
      _
    // Predicated region
    $region90: #{tpu_custom_call.1} parent=1 // pred_check
      _
    $region91: #{tpu_custom_call.1} parent=1 // pred_check_branch
      %75 = sbr.rel (0) target = $region93
    $region92: #{tpu_custom_call.1} parent=1 // pred_region
      _
    $region93: #{tpu_custom_call.1} parent=1 // pred_fallthru
      _
    // Predicated region
    $region94: #{tpu_custom_call.1} parent=1 // pred_check
      _
    $region95: #{tpu_custom_call.1} parent=1 // pred_check_branch
      %77 = sbr.rel (0) target = $region97
    $region96: #{tpu_custom_call.1} parent=1 // pred_region
      _
    $region97: #{tpu_custom_call.1} parent=1 // pred_fallthru
      _
    %v78 = vld [vmem:[%s0] sm:$0xff]
    %v79 = vld [vmem:[%s0 + $0x8] sm:$0xff]
    %v80 = vld [vmem:[%s1] sm:$0xff]
    %v81 = vld [vmem:[%s1 + $0x8] sm:$0xff]
    %v82 = vld [vmem:[%s2] sm:$0xff]
    %v83 = vld [vmem:[%s2 + $0x8] sm:$0xff]
    %v84 = vld [vmem:[%s2 + $0x10] sm:$0xff]
    %v85 = vld [vmem:[%s3] sm:$0xff]
    %v86 = vld [vmem:[%s3 + $0x8] sm:$0xff]
    %v87 = vld [vmem:[%s3 + $0x10] sm:$0xff]
    %v88 = vld [vmem:[%s4] sm:$0xff]
    %v89 = vld [vmem:[%s4 + $0x8] sm:$0xff]
    %v90 = vld [vmem:[%s5] sm:$0xff]
    %v91 = vld [vmem:[%s5 + $0x8] sm:$0xff]
    %v92 = vld [vmem:[%s5 + $0x10] sm:$0xff]
    %v93 = vld [vmem:[%s6] sm:$0xff]
    %v94 = vld [vmem:[%s6 + $0x8] sm:$0xff]
    %v95 = vld [vmem:[%s7] sm:$0xff]
    %v96 = vld [vmem:[%s7 + $0x8] sm:$0xff]
    %v97 = vld [vmem:[%s7 + $0x10] sm:$0xff]
    %v98 = vld [vmem:[%s8] sm:$0xff]
    %v99 = vld [vmem:[%s8 + $0x8] sm:$0xff]
    %v100 = vld [vmem:[%s8 + $0x10] sm:$0xff]
    %v101 = vld [vmem:[%s8 + $0x18] sm:$0xff]
    %v102 = vld [vmem:[%s8 + $0x20] sm:$0xff]
    %v103 = vld [vmem:[%s9] sm:$0xff]
    %v104 = vld [vmem:[%s9 + $0x8] sm:$0xff]
    %v105 = vld [vmem:[%s9 + $0x10] sm:$0xff]
    %v106 = vld [vmem:[%s9 + $0x18] sm:$0xff]
    %v107 = vld [vmem:[%s9 + $0x20] sm:$0xff]
    %v108 = vld [vmem:[%s9 + $0x28] sm:$0xff]
    %v109 = vld [vmem:[%s10] sm:$0xff]
    %v110 = vld [vmem:[%s10 + $0x8] sm:$0xff]
    %v111 = vld [vmem:[%s10 + $0x10] sm:$0xff]
    %v112 = vld [vmem:[%s10 + $0x18] sm:$0xff]
    %v113 = vld [vmem:[%s10 + $0x20] sm:$0xff]
    %v114 = vld [vmem:[%s11] sm:$0xff]
    %v115 = vld [vmem:[%s11 + $0x8] sm:$0xff]
    %v116 = vld [vmem:[%s11 + $0x10] sm:$0xff]
    %v117 = vld [vmem:[%s11 + $0x18] sm:$0xff]
    %v118 = vld [vmem:[%s11 + $0x20] sm:$0xff]
    %v119 = vld [vmem:[%s11 + $0x28] sm:$0xff]
    %v120 = vld [vmem:[%s12] sm:$0xff]
    %v121 = vld [vmem:[%s12 + $0x8] sm:$0xff]
    %v122 = vld [vmem:[%s12 + $0x10] sm:$0xff]
    %v123 = vld [vmem:[%s12 + $0x18] sm:$0xff]
    %v124 = vld [vmem:[%s13] sm:$0xff]
    %v125 = vld [vmem:[%s13 + $0x8] sm:$0xff]
    %v126 = vld [vmem:[%s13 + $0x10] sm:$0xff]
    %v127 = vld [vmem:[%s13 + $0x18] sm:$0xff]
    %v128 = vld [vmem:[%s14] sm:$0xff]
    %v129 = vld [vmem:[%s14 + $0x8] sm:$0xff]
    %v130 = vld [vmem:[%s14 + $0x10] sm:$0xff]
    %v131 = vld [vmem:[%s14 + $0x18] sm:$0xff]
    %v132 = vld [vmem:[%s15] sm:$0xff]
    %v133 = vld [vmem:[%s15 + $0x8] sm:$0xff]
    %v134 = vld [vmem:[%s15 + $0x10] sm:$0xff]
    %v135 = vld [vmem:[%s15 + $0x18] sm:$0xff]
    %v136 = vld [vmem:[%s16] sm:$0xff]
    %v137 = vld [vmem:[%s16 + $0x8] sm:$0xff]
    %v138 = vld [vmem:[%s16 + $0x10] sm:$0xff]
    %v139 = vld [vmem:[%s16 + $0x18] sm:$0xff]
    %v140 = vld [vmem:[%s17] sm:$0xff]
    %v141 = vld [vmem:[%s17 + $0x8] sm:$0xff]
    %v142 = vld [vmem:[%s17 + $0x10] sm:$0xff]
    %v143 = vld [vmem:[%s17 + $0x18] sm:$0xff]
    %v144 = vld [vmem:[%s18] sm:$0xff]
    %v145 = vld [vmem:[%s18 + $0x8] sm:$0xff]
    %v146 = vld [vmem:[%s18 + $0x10] sm:$0xff]
    %v147 = vld [vmem:[%s18 + $0x18] sm:$0xff]
    %v148 = vld [vmem:[%s19] sm:$0xff]
    %v149 = vld [vmem:[%s19 + $0x8] sm:$0xff]
    %v150 = vld [vmem:[%s19 + $0x10] sm:$0xff]
    %v151 = vld [vmem:[%s19 + $0x18] sm:$0xff]
    %v152 = vld [vmem:[%s20] sm:$0xff]
    %v153 = vld [vmem:[%s20 + $0x8] sm:$0xff]
    %v154 = vld [vmem:[%s20 + $0x10] sm:$0xff]
    %v155 = vld [vmem:[%s20 + $0x18] sm:$0xff]
    %v156 = vld [vmem:[%s21] sm:$0xff]
    %v157 = vld [vmem:[%s21 + $0x8] sm:$0xff]
    %v158 = vld [vmem:[%s21 + $0x10] sm:$0xff]
    %v159 = vld [vmem:[%s21 + $0x18] sm:$0xff]
    %v160 = vld [vmem:[%s21 + $0x20] sm:$0xff]
    %v161 = vld [vmem:[%s21 + $0x28] sm:$0xff]
    %v162 = vld [vmem:[%s21 + $0x30] sm:$0xff]
    %v163 = vld [vmem:[%s21 + $0x38] sm:$0xff]
    %v164 = vld [vmem:[%s21 + $0x40] sm:$0xff]
    %v165 = vld [vmem:[%s21 + $0x48] sm:$0xff]
    %v166 = vld [vmem:[%s21 + $0x50] sm:$0xff]
    %v167 = vld [vmem:[%s21 + $0x58] sm:$0xff]
    %v168 = vld [vmem:[%s21 + $0x60] sm:$0xff]
    %v169 = vld [vmem:[%s21 + $0x68] sm:$0xff]
    %v170 = vld [vmem:[%s21 + $0x70] sm:$0xff]
    %v171 = vld [vmem:[%s21 + $0x78] sm:$0xff]
    %v172 = vld [vmem:[%s22] sm:$0xff]
    %v173 = vld [vmem:[%s22 + $0x8] sm:$0xff]
    %v174 = vld [vmem:[%s22 + $0x10] sm:$0xff]
    %v175 = vld [vmem:[%s22 + $0x18] sm:$0xff]
    %v176 = vld [vmem:[%s22 + $0x20] sm:$0xff]
    %v177 = vld [vmem:[%s22 + $0x28] sm:$0xff]
    %v178 = vld [vmem:[%s22 + $0x30] sm:$0xff]
    %v179 = vld [vmem:[%s22 + $0x38] sm:$0xff]
    %v180 = vld [vmem:[%s22 + $0x40] sm:$0xff]
    %v181 = vld [vmem:[%s22 + $0x48] sm:$0xff]
    %v182 = vld [vmem:[%s22 + $0x50] sm:$0xff]
    %v183 = vld [vmem:[%s22 + $0x58] sm:$0xff]
    %v184 = vld [vmem:[%s22 + $0x60] sm:$0xff]
    %v185 = vld [vmem:[%s22 + $0x68] sm:$0xff]
    %v186 = vld [vmem:[%s22 + $0x70] sm:$0xff]
    %v187 = vld [vmem:[%s22 + $0x78] sm:$0xff]
    %v188 = vld [vmem:[%s23] sm:$0xff]
    %v189 = vld [vmem:[%s23 + $0x8] sm:$0xff]
    %v190 = vld [vmem:[%s23 + $0x10] sm:$0xff]
    %v191 = vld [vmem:[%s23 + $0x18] sm:$0xff]
    %v192 = vld [vmem:[%s23 + $0x20] sm:$0xff]
    %v193 = vld [vmem:[%s23 + $0x28] sm:$0xff]
    %v194 = vld [vmem:[%s23 + $0x30] sm:$0xff]
    %v195 = vld [vmem:[%s23 + $0x38] sm:$0xff]
    %v196 = vld [vmem:[%s23 + $0x40] sm:$0xff]
    %v197 = vld [vmem:[%s23 + $0x48] sm:$0xff]
    %v198 = vld [vmem:[%s23 + $0x50] sm:$0xff]
    %v199 = vld [vmem:[%s23 + $0x58] sm:$0xff]
    %v200 = vld [vmem:[%s23 + $0x60] sm:$0xff]
    %v201 = vld [vmem:[%s23 + $0x68] sm:$0xff]
    %v202 = vld [vmem:[%s23 + $0x70] sm:$0xff]
    %v203 = vld [vmem:[%s23 + $0x78] sm:$0xff]
    %vm204 = vcmask 326656
    %v206 = vsel %vm204, %v93, 0
    %v209 = vsel %vm204, %v94, 0
    %211 = vmatpush.msra.mxu0 0.0
    %212 = vmatpush.msra.mxu0 0.0
    %213 = vmatpush.msra.mxu0 0.0
    %214 = vmatpush.msra.mxu0 0.0
    %215 = vmatpush.msra.mxu0 0.0
    %216 = vmatpush.msra.mxu0 0.0
    %217 = vmatpush.msra.mxu0 0.0
    %218 = vmatpush.msra.mxu0 0.0
    %219 = vmatpush.msra.mxu0 0.0
    %220 = vmatpush.msra.mxu0 0.0
    %221 = vmatpush.msra.mxu0 0.0
    %222 = vmatpush.msra.mxu0 %v102
    %223 = vmatpush.msra.mxu0 %v101
    %224 = vmatpush.msra.mxu0 %v100
    %225 = vmatpush.msra.mxu0 %v99
    %226 = vmatpush.msra.mxu0 %v98
    %227 = vmatmul.f32.gmra.mxu0 %v206
    %v228 = vpop.f32.mrf.mxu0
    %v229 = vadd.f32 0.0, %v228
    %230 = vmatmul.f32.gmra.mxu0 %v209
    %v231 = vpop.f32.mrf.mxu0
    %v232 = vadd.f32 0.0, %v231
    %233 = vdwg.mxu0
    %vm234 = vcmask 130048
    %v236 = vsel %vm234, %v78, 0
    %v239 = vsel %vm234, %v79, 0
    %241 = vmatpush.msra.mxu0 0.0
    %242 = vmatpush.msra.mxu0 0.0
    %243 = vmatpush.msra.mxu0 0.0
    %244 = vmatpush.msra.mxu0 0.0
    %245 = vmatpush.msra.mxu0 0.0
    %246 = vmatpush.msra.mxu0 0.0
    %247 = vmatpush.msra.mxu0 0.0
    %248 = vmatpush.msra.mxu0 0.0
    %249 = vmatpush.msra.mxu0 0.0
    %250 = vmatpush.msra.mxu0 0.0
    %251 = vmatpush.msra.mxu0 0.0
    %252 = vmatpush.msra.mxu0 0.0
    %253 = vmatpush.msra.mxu0 0.0
    %254 = vmatpush.msra.mxu0 0.0
    %255 = vmatpush.msra.mxu0 %v232
    %256 = vmatpush.msra.mxu0 %v229
    %257 = vmatmul.f32.gmra.mxu0 %v236
    %v258 = vpop.f32.mrf.mxu0
    %v259 = vadd.f32 0.0, %v258
    %260 = vmatmul.f32.gmra.mxu0 %v239
    %v261 = vpop.f32.mrf.mxu0
    %v262 = vadd.f32 0.0, %v261
    %263 = vdwg.mxu0
    %v264 = vmax.f32 %v259, 0.0
    %v265 = vmax.f32 %v262, 0.0
    %vm266 = vcmask 392192
    %v268 = vsel %vm266, %v95, 0
    %v271 = vsel %vm266, %v96, 0
    %v274 = vsel %vm266, %v97, 0
    %276 = vmatpush.msra.mxu0 0.0
    %277 = vmatpush.msra.mxu0 0.0
    %278 = vmatpush.msra.mxu0 0.0
    %279 = vmatpush.msra.mxu0 0.0
    %280 = vmatpush.msra.mxu0 0.0
    %281 = vmatpush.msra.mxu0 0.0
    %282 = vmatpush.msra.mxu0 0.0
    %283 = vmatpush.msra.mxu0 0.0
    %284 = vmatpush.msra.mxu0 0.0
    %285 = vmatpush.msra.mxu0 0.0
    %286 = vmatpush.msra.mxu0 %v108
    %287 = vmatpush.msra.mxu0 %v107
    %288 = vmatpush.msra.mxu0 %v106
    %289 = vmatpush.msra.mxu0 %v105
    %290 = vmatpush.msra.mxu0 %v104
    %291 = vmatpush.msra.mxu0 %v103
    %292 = vmatmul.f32.gmra.mxu0 %v268
    %v293 = vpop.f32.mrf.mxu0
    %v294 = vadd.f32 0.0, %v293
    %295 = vmatmul.f32.gmra.mxu0 %v271
    %v296 = vpop.f32.mrf.mxu0
    %v297 = vadd.f32 0.0, %v296
    %298 = vmatmul.f32.gmra.mxu0 %v274
    %v299 = vpop.f32.mrf.mxu0
    %v300 = vadd.f32 0.0, %v299
    %301 = vdwg.mxu0
    %vm302 = vcmask 195584
    %v304 = vsel %vm302, %v80, 0
    %v307 = vsel %vm302, %v81, 0
    %309 = vmatpush.msra.mxu0 0.0
    %310 = vmatpush.msra.mxu0 0.0
    %311 = vmatpush.msra.mxu0 0.0
    %312 = vmatpush.msra.mxu0 0.0
    %313 = vmatpush.msra.mxu0 0.0
    %314 = vmatpush.msra.mxu0 0.0
    %315 = vmatpush.msra.mxu0 0.0
    %316 = vmatpush.msra.mxu0 0.0
    %317 = vmatpush.msra.mxu0 0.0
    %318 = vmatpush.msra.mxu0 0.0
    %319 = vmatpush.msra.mxu0 0.0
    %320 = vmatpush.msra.mxu0 0.0
    %321 = vmatpush.msra.mxu0 0.0
    %322 = vmatpush.msra.mxu0 %v300
    %323 = vmatpush.msra.mxu0 %v297
    %324 = vmatpush.msra.mxu0 %v294
    %325 = vmatmul.f32.gmra.mxu0 %v304
    %v326 = vpop.f32.mrf.mxu0
    %v327 = vadd.f32 0.0, %v326
    %328 = vmatmul.f32.gmra.mxu0 %v307
    %v329 = vpop.f32.mrf.mxu0
    %v330 = vadd.f32 0.0, %v329
    %331 = vdwg.mxu0
    %v332 = vmax.f32 %v327, 0.0
    %v333 = vmax.f32 %v330, 0.0
    %v334 = vadd.f32 %v264, %v332
    %v335 = vadd.f32 %v265, %v333
    %336 = vmatpush.msra.mxu0 0.0
    %337 = vmatpush.msra.mxu0 0.0
    %338 = vmatpush.msra.mxu0 0.0
    %339 = vmatpush.msra.mxu0 0.0
    %340 = vmatpush.msra.mxu0 0.0
    %341 = vmatpush.msra.mxu0 0.0
    %342 = vmatpush.msra.mxu0 0.0
    %343 = vmatpush.msra.mxu0 0.0
    %344 = vmatpush.msra.mxu0 0.0
    %345 = vmatpush.msra.mxu0 0.0
    %346 = vmatpush.msra.mxu0 0.0
    %347 = vmatpush.msra.mxu0 %v113
    %348 = vmatpush.msra.mxu0 %v112
    %349 = vmatpush.msra.mxu0 %v111
    %350 = vmatpush.msra.mxu0 %v110
    %351 = vmatpush.msra.mxu0 %v109
    %352 = vmatmul.f32.gmra.mxu0 %v206
    %v353 = vpop.f32.mrf.mxu0
    %v354 = vadd.f32 0.0, %v353
    %355 = vmatmul.f32.gmra.mxu0 %v209
    %v356 = vpop.f32.mrf.mxu0
    %v357 = vadd.f32 0.0, %v356
    %358 = vdwg.mxu0
    %v360 = vsel %vm234, %v82, 0
    %v363 = vsel %vm234, %v83, 0
    %v366 = vsel %vm234, %v84, 0
    %368 = vmatpush.msra.mxu0 0.0
    %369 = vmatpush.msra.mxu0 0.0
    %370 = vmatpush.msra.mxu0 0.0
    %371 = vmatpush.msra.mxu0 0.0
    %372 = vmatpush.msra.mxu0 0.0
    %373 = vmatpush.msra.mxu0 0.0
    %374 = vmatpush.msra.mxu0 0.0
    %375 = vmatpush.msra.mxu0 0.0
    %376 = vmatpush.msra.mxu0 0.0
    %377 = vmatpush.msra.mxu0 0.0
    %378 = vmatpush.msra.mxu0 0.0
    %379 = vmatpush.msra.mxu0 0.0
    %380 = vmatpush.msra.mxu0 0.0
    %381 = vmatpush.msra.mxu0 0.0
    %382 = vmatpush.msra.mxu0 %v357
    %383 = vmatpush.msra.mxu0 %v354
    %384 = vmatmul.f32.gmra.mxu0 %v360
    %v385 = vpop.f32.mrf.mxu0
    %v386 = vadd.f32 0.0, %v385
    %387 = vmatmul.f32.gmra.mxu0 %v363
    %v388 = vpop.f32.mrf.mxu0
    %v389 = vadd.f32 0.0, %v388
    %390 = vmatmul.f32.gmra.mxu0 %v366
    %v391 = vpop.f32.mrf.mxu0
    %v392 = vadd.f32 0.0, %v391
    %393 = vdwg.mxu0
    %v394 = vmax.f32 %v386, 0.0
    %v395 = vmax.f32 %v389, 0.0
    %v396 = vmax.f32 %v392, 0.0
    %397 = vmatpush.msra.mxu0 0.0
    %398 = vmatpush.msra.mxu0 0.0
    %399 = vmatpush.msra.mxu0 0.0
    %400 = vmatpush.msra.mxu0 0.0
    %401 = vmatpush.msra.mxu0 0.0
    %402 = vmatpush.msra.mxu0 0.0
    %403 = vmatpush.msra.mxu0 0.0
    %404 = vmatpush.msra.mxu0 0.0
    %405 = vmatpush.msra.mxu0 0.0
    %406 = vmatpush.msra.mxu0 0.0
    %407 = vmatpush.msra.mxu0 %v119
    %408 = vmatpush.msra.mxu0 %v118
    %409 = vmatpush.msra.mxu0 %v117
    %410 = vmatpush.msra.mxu0 %v116
    %411 = vmatpush.msra.mxu0 %v115
    %412 = vmatpush.msra.mxu0 %v114
    %413 = vmatmul.f32.gmra.mxu0 %v268
    %v414 = vpop.f32.mrf.mxu0
    %v415 = vadd.f32 0.0, %v414
    %416 = vmatmul.f32.gmra.mxu0 %v271
    %v417 = vpop.f32.mrf.mxu0
    %v418 = vadd.f32 0.0, %v417
    %419 = vmatmul.f32.gmra.mxu0 %v274
    %v420 = vpop.f32.mrf.mxu0
    %v421 = vadd.f32 0.0, %v420
    %422 = vdwg.mxu0
    %v424 = vsel %vm302, %v85, 0
    %v427 = vsel %vm302, %v86, 0
    %v430 = vsel %vm302, %v87, 0
    %432 = vmatpush.msra.mxu0 0.0
    %433 = vmatpush.msra.mxu0 0.0
    %434 = vmatpush.msra.mxu0 0.0
    %435 = vmatpush.msra.mxu0 0.0
    %436 = vmatpush.msra.mxu0 0.0
    %437 = vmatpush.msra.mxu0 0.0
    %438 = vmatpush.msra.mxu0 0.0
    %439 = vmatpush.msra.mxu0 0.0
    %440 = vmatpush.msra.mxu0 0.0
    %441 = vmatpush.msra.mxu0 0.0
    %442 = vmatpush.msra.mxu0 0.0
    %443 = vmatpush.msra.mxu0 0.0
    %444 = vmatpush.msra.mxu0 0.0
    %445 = vmatpush.msra.mxu0 %v421
    %446 = vmatpush.msra.mxu0 %v418
    %447 = vmatpush.msra.mxu0 %v415
    %448 = vmatmul.f32.gmra.mxu0 %v424
    %v449 = vpop.f32.mrf.mxu0
    %v450 = vadd.f32 0.0, %v449
    %451 = vmatmul.f32.gmra.mxu0 %v427
    %v452 = vpop.f32.mrf.mxu0
    %v453 = vadd.f32 0.0, %v452
    %454 = vmatmul.f32.gmra.mxu0 %v430
    %v455 = vpop.f32.mrf.mxu0
    %v456 = vadd.f32 0.0, %v455
    %457 = vdwg.mxu0
    %v458 = vmax.f32 %v450, 0.0
    %v459 = vmax.f32 %v453, 0.0
    %v460 = vmax.f32 %v456, 0.0
    %v461 = vadd.f32 %v394, %v458
    %v462 = vadd.f32 %v395, %v459
    %v463 = vadd.f32 %v396, %v460
    %vm464 = vcmask 261120
    %v466 = vsel %vm464, %v334, 0
    %v469 = vsel %vm464, %v335, 0
    %471 = vmatpush.msra.mxu0 0.0
    %472 = vmatpush.msra.mxu0 0.0
    %473 = vmatpush.msra.mxu0 0.0
    %474 = vmatpush.msra.mxu0 0.0
    %475 = vmatpush.msra.mxu0 0.0
    %476 = vmatpush.msra.mxu0 0.0
    %477 = vmatpush.msra.mxu0 0.0
    %478 = vmatpush.msra.mxu0 0.0
    %479 = vmatpush.msra.mxu0 0.0
    %480 = vmatpush.msra.mxu0 0.0
    %481 = vmatpush.msra.mxu0 0.0
    %482 = vmatpush.msra.mxu0 0.0
    %483 = vmatpush.msra.mxu0 %v123
    %484 = vmatpush.msra.mxu0 %v122
    %485 = vmatpush.msra.mxu0 %v121
    %486 = vmatpush.msra.mxu0 %v120
    %487 = vmatmul.f32.gmra.mxu0 %v466
    %v488 = vpop.f32.mrf.mxu0
    %v489 = vadd.f32 0.0, %v488
    %490 = vmatmul.f32.gmra.mxu0 %v469
    %v491 = vpop.f32.mrf.mxu0
    %v492 = vadd.f32 0.0, %v491
    %493 = vdwg.mxu0
    %494 = vmatpush.msra.mxu0 0.0
    %495 = vmatpush.msra.mxu0 0.0
    %496 = vmatpush.msra.mxu0 0.0
    %497 = vmatpush.msra.mxu0 0.0
    %498 = vmatpush.msra.mxu0 0.0
    %499 = vmatpush.msra.mxu0 0.0
    %500 = vmatpush.msra.mxu0 0.0
    %501 = vmatpush.msra.mxu0 0.0
    %502 = vmatpush.msra.mxu0 0.0
    %503 = vmatpush.msra.mxu0 0.0
    %504 = vmatpush.msra.mxu0 0.0
    %505 = vmatpush.msra.mxu0 0.0
    %506 = vmatpush.msra.mxu0 0.0
    %507 = vmatpush.msra.mxu0 0.0
    %508 = vmatpush.msra.mxu0 %v492
    %509 = vmatpush.msra.mxu0 %v489
    %510 = vmatmul.f32.gmra.mxu0 %v236
    %v511 = vpop.f32.mrf.mxu0
    %v512 = vadd.f32 0.0, %v511
    %513 = vmatmul.f32.gmra.mxu0 %v239
    %v514 = vpop.f32.mrf.mxu0
    %v515 = vadd.f32 0.0, %v514
    %516 = vdwg.mxu0
    %v517 = vmax.f32 %v512, 0.0
    %v518 = vmax.f32 %v515, 0.0
    %v520 = vsel %vm464, %v461, 0
    %v523 = vsel %vm464, %v462, 0
    %v526 = vsel %vm464, %v463, 0
    %528 = vmatpush.msra.mxu0 0.0
    %529 = vmatpush.msra.mxu0 0.0
    %530 = vmatpush.msra.mxu0 0.0
    %531 = vmatpush.msra.mxu0 0.0
    %532 = vmatpush.msra.mxu0 0.0
    %533 = vmatpush.msra.mxu0 0.0
    %534 = vmatpush.msra.mxu0 0.0
    %535 = vmatpush.msra.mxu0 0.0
    %536 = vmatpush.msra.mxu0 0.0
    %537 = vmatpush.msra.mxu0 0.0
    %538 = vmatpush.msra.mxu0 0.0
    %539 = vmatpush.msra.mxu0 0.0
    %540 = vmatpush.msra.mxu0 %v127
    %541 = vmatpush.msra.mxu0 %v126
    %542 = vmatpush.msra.mxu0 %v125
    %543 = vmatpush.msra.mxu0 %v124
    %544 = vmatmul.f32.gmra.mxu0 %v520
    %v545 = vpop.f32.mrf.mxu0
    %v546 = vadd.f32 0.0, %v545
    %547 = vmatmul.f32.gmra.mxu0 %v523
    %v548 = vpop.f32.mrf.mxu0
    %v549 = vadd.f32 0.0, %v548
    %550 = vmatmul.f32.gmra.mxu0 %v526
    %v551 = vpop.f32.mrf.mxu0
    %v552 = vadd.f32 0.0, %v551
    %553 = vdwg.mxu0
    %554 = vmatpush.msra.mxu0 0.0
    %555 = vmatpush.msra.mxu0 0.0
    %556 = vmatpush.msra.mxu0 0.0
    %557 = vmatpush.msra.mxu0 0.0
    %558 = vmatpush.msra.mxu0 0.0
    %559 = vmatpush.msra.mxu0 0.0
    %560 = vmatpush.msra.mxu0 0.0
    %561 = vmatpush.msra.mxu0 0.0
    %562 = vmatpush.msra.mxu0 0.0
    %563 = vmatpush.msra.mxu0 0.0
    %564 = vmatpush.msra.mxu0 0.0
    %565 = vmatpush.msra.mxu0 0.0
    %566 = vmatpush.msra.mxu0 0.0
    %567 = vmatpush.msra.mxu0 %v552
    %568 = vmatpush.msra.mxu0 %v549
    %569 = vmatpush.msra.mxu0 %v546
    %570 = vmatmul.f32.gmra.mxu0 %v304
    %v571 = vpop.f32.mrf.mxu0
    %v572 = vadd.f32 0.0, %v571
    %573 = vmatmul.f32.gmra.mxu0 %v307
    %v574 = vpop.f32.mrf.mxu0
    %v575 = vadd.f32 0.0, %v574
    %576 = vdwg.mxu0
    %v577 = vmax.f32 %v572, 0.0
    %v578 = vmax.f32 %v575, 0.0
    %v579 = vadd.f32 %v517, %v577
    %v580 = vadd.f32 %v518, %v578
    %581 = vmatpush.msra.mxu0 0.0
    %582 = vmatpush.msra.mxu0 0.0
    %583 = vmatpush.msra.mxu0 0.0
    %584 = vmatpush.msra.mxu0 0.0
    %585 = vmatpush.msra.mxu0 0.0
    %586 = vmatpush.msra.mxu0 0.0
    %587 = vmatpush.msra.mxu0 0.0
    %588 = vmatpush.msra.mxu0 0.0
    %589 = vmatpush.msra.mxu0 0.0
    %590 = vmatpush.msra.mxu0 0.0
    %591 = vmatpush.msra.mxu0 0.0
    %592 = vmatpush.msra.mxu0 0.0
    %593 = vmatpush.msra.mxu0 %v131
    %594 = vmatpush.msra.mxu0 %v130
    %595 = vmatpush.msra.mxu0 %v129
    %596 = vmatpush.msra.mxu0 %v128
    %597 = vmatmul.f32.gmra.mxu0 %v466
    %v598 = vpop.f32.mrf.mxu0
    %v599 = vadd.f32 0.0, %v598
    %600 = vmatmul.f32.gmra.mxu0 %v469
    %v601 = vpop.f32.mrf.mxu0
    %v602 = vadd.f32 0.0, %v601
    %603 = vdwg.mxu0
    %604 = vmatpush.msra.mxu0 0.0
    %605 = vmatpush.msra.mxu0 0.0
    %606 = vmatpush.msra.mxu0 0.0
    %607 = vmatpush.msra.mxu0 0.0
    %608 = vmatpush.msra.mxu0 0.0
    %609 = vmatpush.msra.mxu0 0.0
    %610 = vmatpush.msra.mxu0 0.0
    %611 = vmatpush.msra.mxu0 0.0
    %612 = vmatpush.msra.mxu0 0.0
    %613 = vmatpush.msra.mxu0 0.0
    %614 = vmatpush.msra.mxu0 0.0
    %615 = vmatpush.msra.mxu0 0.0
    %616 = vmatpush.msra.mxu0 0.0
    %617 = vmatpush.msra.mxu0 0.0
    %618 = vmatpush.msra.mxu0 %v602
    %619 = vmatpush.msra.mxu0 %v599
    %620 = vmatmul.f32.gmra.mxu0 %v360
    %v621 = vpop.f32.mrf.mxu0
    %v622 = vadd.f32 0.0, %v621
    %623 = vmatmul.f32.gmra.mxu0 %v363
    %v624 = vpop.f32.mrf.mxu0
    %v625 = vadd.f32 0.0, %v624
    %626 = vmatmul.f32.gmra.mxu0 %v366
    %v627 = vpop.f32.mrf.mxu0
    %v628 = vadd.f32 0.0, %v627
    %629 = vdwg.mxu0
    %v630 = vmax.f32 %v622, 0.0
    %v631 = vmax.f32 %v625, 0.0
    %v632 = vmax.f32 %v628, 0.0
    %633 = vmatpush.msra.mxu0 0.0
    %634 = vmatpush.msra.mxu0 0.0
    %635 = vmatpush.msra.mxu0 0.0
    %636 = vmatpush.msra.mxu0 0.0
    %637 = vmatpush.msra.mxu0 0.0
    %638 = vmatpush.msra.mxu0 0.0
    %639 = vmatpush.msra.mxu0 0.0
    %640 = vmatpush.msra.mxu0 0.0
    %641 = vmatpush.msra.mxu0 0.0
    %642 = vmatpush.msra.mxu0 0.0
    %643 = vmatpush.msra.mxu0 0.0
    %644 = vmatpush.msra.mxu0 0.0
    %645 = vmatpush.msra.mxu0 %v135
    %646 = vmatpush.msra.mxu0 %v134
    %647 = vmatpush.msra.mxu0 %v133
    %648 = vmatpush.msra.mxu0 %v132
    %649 = vmatmul.f32.gmra.mxu0 %v520
    %v650 = vpop.f32.mrf.mxu0
    %v651 = vadd.f32 0.0, %v650
    %652 = vmatmul.f32.gmra.mxu0 %v523
    %v653 = vpop.f32.mrf.mxu0
    %v654 = vadd.f32 0.0, %v653
    %655 = vmatmul.f32.gmra.mxu0 %v526
    %v656 = vpop.f32.mrf.mxu0
    %v657 = vadd.f32 0.0, %v656
    %658 = vdwg.mxu0
    %659 = vmatpush.msra.mxu0 0.0
    %660 = vmatpush.msra.mxu0 0.0
    %661 = vmatpush.msra.mxu0 0.0
    %662 = vmatpush.msra.mxu0 0.0
    %663 = vmatpush.msra.mxu0 0.0
    %664 = vmatpush.msra.mxu0 0.0
    %665 = vmatpush.msra.mxu0 0.0
    %666 = vmatpush.msra.mxu0 0.0
    %667 = vmatpush.msra.mxu0 0.0
    %668 = vmatpush.msra.mxu0 0.0
    %669 = vmatpush.msra.mxu0 0.0
    %670 = vmatpush.msra.mxu0 0.0
    %671 = vmatpush.msra.mxu0 0.0
    %672 = vmatpush.msra.mxu0 %v657
    %673 = vmatpush.msra.mxu0 %v654
    %674 = vmatpush.msra.mxu0 %v651
    %675 = vmatmul.f32.gmra.mxu0 %v424
    %v676 = vpop.f32.mrf.mxu0
    %v677 = vadd.f32 0.0, %v676
    %678 = vmatmul.f32.gmra.mxu0 %v427
    %v679 = vpop.f32.mrf.mxu0
    %v680 = vadd.f32 0.0, %v679
    %681 = vmatmul.f32.gmra.mxu0 %v430
    %v682 = vpop.f32.mrf.mxu0
    %v683 = vadd.f32 0.0, %v682
    %684 = vdwg.mxu0
    %v685 = vmax.f32 %v677, 0.0
    %v686 = vmax.f32 %v680, 0.0
    %v687 = vmax.f32 %v683, 0.0
    %v688 = vadd.f32 %v630, %v685
    %v689 = vadd.f32 %v631, %v686
    %v690 = vadd.f32 %v632, %v687
    %v692 = vsel %vm464, %v688, 0
    %v695 = vsel %vm464, %v689, 0
    %v698 = vsel %vm464, %v690, 0
    %700 = vmatpush.msra.mxu0 0.0
    %701 = vmatpush.msra.mxu0 0.0
    %702 = vmatpush.msra.mxu0 0.0
    %703 = vmatpush.msra.mxu0 0.0
    %704 = vmatpush.msra.mxu0 0.0
    %705 = vmatpush.msra.mxu0 0.0
    %706 = vmatpush.msra.mxu0 0.0
    %707 = vmatpush.msra.mxu0 0.0
    %708 = vmatpush.msra.mxu0 0.0
    %709 = vmatpush.msra.mxu0 0.0
    %710 = vmatpush.msra.mxu0 0.0
    %711 = vmatpush.msra.mxu0 0.0
    %712 = vmatpush.msra.mxu0 %v139
    %713 = vmatpush.msra.mxu0 %v138
    %714 = vmatpush.msra.mxu0 %v137
    %715 = vmatpush.msra.mxu0 %v136
    %716 = vmatmul.f32.gmra.mxu0 %v692
    %v717 = vpop.f32.mrf.mxu0
    %v718 = vadd.f32 0.0, %v717
    %719 = vmatmul.f32.gmra.mxu0 %v695
    %v720 = vpop.f32.mrf.mxu0
    %v721 = vadd.f32 0.0, %v720
    %722 = vmatmul.f32.gmra.mxu0 %v698
    %v723 = vpop.f32.mrf.mxu0
    %v724 = vadd.f32 0.0, %v723
    %725 = vdwg.mxu0
    %v727 = vsel %vm302, %v88, 0
    %v730 = vsel %vm302, %v89, 0
    %732 = vmatpush.msra.mxu0 0.0
    %733 = vmatpush.msra.mxu0 0.0
    %734 = vmatpush.msra.mxu0 0.0
    %735 = vmatpush.msra.mxu0 0.0
    %736 = vmatpush.msra.mxu0 0.0
    %737 = vmatpush.msra.mxu0 0.0
    %738 = vmatpush.msra.mxu0 0.0
    %739 = vmatpush.msra.mxu0 0.0
    %740 = vmatpush.msra.mxu0 0.0
    %741 = vmatpush.msra.mxu0 0.0
    %742 = vmatpush.msra.mxu0 0.0
    %743 = vmatpush.msra.mxu0 0.0
    %744 = vmatpush.msra.mxu0 0.0
    %745 = vmatpush.msra.mxu0 %v724
    %746 = vmatpush.msra.mxu0 %v721
    %747 = vmatpush.msra.mxu0 %v718
    %748 = vmatmul.f32.gmra.mxu0 %v727
    %v749 = vpop.f32.mrf.mxu0
    %v750 = vadd.f32 0.0, %v749
    %751 = vmatmul.f32.gmra.mxu0 %v730
    %v752 = vpop.f32.mrf.mxu0
    %v753 = vadd.f32 0.0, %v752
    %754 = vdwg.mxu0
    %v755 = vmax.f32 %v750, 0.0
    %v756 = vmax.f32 %v753, 0.0
    %v758 = vsel %vm464, %v579, 0
    %v761 = vsel %vm464, %v580, 0
    %763 = vmatpush.msra.mxu0 0.0
    %764 = vmatpush.msra.mxu0 0.0
    %765 = vmatpush.msra.mxu0 0.0
    %766 = vmatpush.msra.mxu0 0.0
    %767 = vmatpush.msra.mxu0 0.0
    %768 = vmatpush.msra.mxu0 0.0
    %769 = vmatpush.msra.mxu0 0.0
    %770 = vmatpush.msra.mxu0 0.0
    %771 = vmatpush.msra.mxu0 0.0
    %772 = vmatpush.msra.mxu0 0.0
    %773 = vmatpush.msra.mxu0 0.0
    %774 = vmatpush.msra.mxu0 0.0
    %775 = vmatpush.msra.mxu0 %v143
    %776 = vmatpush.msra.mxu0 %v142
    %777 = vmatpush.msra.mxu0 %v141
    %778 = vmatpush.msra.mxu0 %v140
    %779 = vmatmul.f32.gmra.mxu0 %v758
    %v780 = vpop.f32.mrf.mxu0
    %v781 = vadd.f32 0.0, %v780
    %782 = vmatmul.f32.gmra.mxu0 %v761
    %v783 = vpop.f32.mrf.mxu0
    %v784 = vadd.f32 0.0, %v783
    %785 = vdwg.mxu0
    %v787 = vsel %vm234, %v90, 0
    %v790 = vsel %vm234, %v91, 0
    %v793 = vsel %vm234, %v92, 0
    %795 = vmatpush.msra.mxu0 0.0
    %796 = vmatpush.msra.mxu0 0.0
    %797 = vmatpush.msra.mxu0 0.0
    %798 = vmatpush.msra.mxu0 0.0
    %799 = vmatpush.msra.mxu0 0.0
    %800 = vmatpush.msra.mxu0 0.0
    %801 = vmatpush.msra.mxu0 0.0
    %802 = vmatpush.msra.mxu0 0.0
    %803 = vmatpush.msra.mxu0 0.0
    %804 = vmatpush.msra.mxu0 0.0
    %805 = vmatpush.msra.mxu0 0.0
    %806 = vmatpush.msra.mxu0 0.0
    %807 = vmatpush.msra.mxu0 0.0
    %808 = vmatpush.msra.mxu0 0.0
    %809 = vmatpush.msra.mxu0 %v784
    %810 = vmatpush.msra.mxu0 %v781
    %811 = vmatmul.f32.gmra.mxu0 %v787
    %v812 = vpop.f32.mrf.mxu0
    %v813 = vadd.f32 0.0, %v812
    %814 = vmatmul.f32.gmra.mxu0 %v790
    %v815 = vpop.f32.mrf.mxu0
    %v816 = vadd.f32 0.0, %v815
    %817 = vmatmul.f32.gmra.mxu0 %v793
    %v818 = vpop.f32.mrf.mxu0
    %v819 = vadd.f32 0.0, %v818
    %820 = vdwg.mxu0
    %v821 = vmax.f32 %v813, 0.0
    %v822 = vmax.f32 %v816, 0.0
    %v823 = vmax.f32 %v819, 0.0
    %v825 = vsel %vm464, %v821, 0
    %v828 = vsel %vm464, %v822, 0
    %v831 = vsel %vm464, %v823, 0
    %833 = vmatpush.msra.mxu0 0.0
    %834 = vmatpush.msra.mxu0 0.0
    %835 = vmatpush.msra.mxu0 0.0
    %836 = vmatpush.msra.mxu0 0.0
    %837 = vmatpush.msra.mxu0 0.0
    %838 = vmatpush.msra.mxu0 0.0
    %839 = vmatpush.msra.mxu0 0.0
    %840 = vmatpush.msra.mxu0 0.0
    %841 = vmatpush.msra.mxu0 0.0
    %842 = vmatpush.msra.mxu0 0.0
    %843 = vmatpush.msra.mxu0 0.0
    %844 = vmatpush.msra.mxu0 0.0
    %845 = vmatpush.msra.mxu0 %v147
    %846 = vmatpush.msra.mxu0 %v146
    %847 = vmatpush.msra.mxu0 %v145
    %848 = vmatpush.msra.mxu0 %v144
    %849 = vmatmul.f32.gmra.mxu0 %v825
    %v850 = vpop.f32.mrf.mxu0
    %v851 = vadd.f32 0.0, %v850
    %852 = vmatmul.f32.gmra.mxu0 %v828
    %v853 = vpop.f32.mrf.mxu0
    %v854 = vadd.f32 0.0, %v853
    %855 = vmatmul.f32.gmra.mxu0 %v831
    %v856 = vpop.f32.mrf.mxu0
    %v857 = vadd.f32 0.0, %v856
    %858 = vdwg.mxu0
    %859 = vmatpush.msra.mxu0 0.0
    %860 = vmatpush.msra.mxu0 0.0
    %861 = vmatpush.msra.mxu0 0.0
    %862 = vmatpush.msra.mxu0 0.0
    %863 = vmatpush.msra.mxu0 0.0
    %864 = vmatpush.msra.mxu0 0.0
    %865 = vmatpush.msra.mxu0 0.0
    %866 = vmatpush.msra.mxu0 0.0
    %867 = vmatpush.msra.mxu0 0.0
    %868 = vmatpush.msra.mxu0 0.0
    %869 = vmatpush.msra.mxu0 0.0
    %870 = vmatpush.msra.mxu0 0.0
    %871 = vmatpush.msra.mxu0 0.0
    %872 = vmatpush.msra.mxu0 %v857
    %873 = vmatpush.msra.mxu0 %v854
    %874 = vmatpush.msra.mxu0 %v851
    %875 = vmatmul.f32.gmra.mxu0 %v727
    %v876 = vpop.f32.mrf.mxu0
    %v877 = vadd.f32 0.0, %v876
    %878 = vmatmul.f32.gmra.mxu0 %v730
    %v879 = vpop.f32.mrf.mxu0
    %v880 = vadd.f32 0.0, %v879
    %881 = vdwg.mxu0
    %v882 = vmax.f32 %v877, 0.0
    %v883 = vmax.f32 %v880, 0.0
    %v885 = vsel %vm464, %v755, 0
    %v888 = vsel %vm464, %v756, 0
    %890 = vmatpush.msra.mxu0 0.0
    %891 = vmatpush.msra.mxu0 0.0
    %892 = vmatpush.msra.mxu0 0.0
    %893 = vmatpush.msra.mxu0 0.0
    %894 = vmatpush.msra.mxu0 0.0
    %895 = vmatpush.msra.mxu0 0.0
    %896 = vmatpush.msra.mxu0 0.0
    %897 = vmatpush.msra.mxu0 0.0
    %898 = vmatpush.msra.mxu0 0.0
    %899 = vmatpush.msra.mxu0 0.0
    %900 = vmatpush.msra.mxu0 0.0
    %901 = vmatpush.msra.mxu0 0.0
    %902 = vmatpush.msra.mxu0 %v151
    %903 = vmatpush.msra.mxu0 %v150
    %904 = vmatpush.msra.mxu0 %v149
    %905 = vmatpush.msra.mxu0 %v148
    %906 = vmatmul.f32.gmra.mxu0 %v885
    %v907 = vpop.f32.mrf.mxu0
    %v908 = vadd.f32 0.0, %v907
    %909 = vmatmul.f32.gmra.mxu0 %v888
    %v910 = vpop.f32.mrf.mxu0
    %v911 = vadd.f32 0.0, %v910
    %912 = vdwg.mxu0
    %913 = vmatpush.msra.mxu0 0.0
    %914 = vmatpush.msra.mxu0 0.0
    %915 = vmatpush.msra.mxu0 0.0
    %916 = vmatpush.msra.mxu0 0.0
    %917 = vmatpush.msra.mxu0 0.0
    %918 = vmatpush.msra.mxu0 0.0
    %919 = vmatpush.msra.mxu0 0.0
    %920 = vmatpush.msra.mxu0 0.0
    %921 = vmatpush.msra.mxu0 0.0
    %922 = vmatpush.msra.mxu0 0.0
    %923 = vmatpush.msra.mxu0 0.0
    %924 = vmatpush.msra.mxu0 0.0
    %925 = vmatpush.msra.mxu0 0.0
    %926 = vmatpush.msra.mxu0 0.0
    %927 = vmatpush.msra.mxu0 %v911
    %928 = vmatpush.msra.mxu0 %v908
    %929 = vmatmul.f32.gmra.mxu0 %v787
    %v930 = vpop.f32.mrf.mxu0
    %v931 = vadd.f32 0.0, %v930
    %932 = vmatmul.f32.gmra.mxu0 %v790
    %v933 = vpop.f32.mrf.mxu0
    %v934 = vadd.f32 0.0, %v933
    %935 = vmatmul.f32.gmra.mxu0 %v793
    %v936 = vpop.f32.mrf.mxu0
    %v937 = vadd.f32 0.0, %v936
    %938 = vdwg.mxu0
    %v939 = vmax.f32 %v931, 0.0
    %v940 = vmax.f32 %v934, 0.0
    %v941 = vmax.f32 %v937, 0.0
    %v942 = vlaneseq
    %v943 = vand.u32 %v942, 127
    %944 = vset.pattern.permute.xlu0 0
    %945 = vperm.xlu0 %944, %v156
    %v946 = vpop.permute.xlu0 %945
    %947 = vset.pattern.permute.xlu0 0
    %948 = vperm.xlu0 %947, %v157
    %v949 = vpop.permute.xlu0 %948
    %950 = vset.pattern.permute.xlu0 0
    %951 = vperm.xlu0 %950, %v158
    %v952 = vpop.permute.xlu0 %951
    %953 = vset.pattern.permute.xlu0 0
    %954 = vperm.xlu0 %953, %v159
    %v955 = vpop.permute.xlu0 %954
    %956 = vset.pattern.permute.xlu0 0
    %957 = vperm.xlu0 %956, %v160
    %v958 = vpop.permute.xlu0 %957
    %959 = vset.pattern.permute.xlu0 0
    %960 = vperm.xlu0 %959, %v161
    %v961 = vpop.permute.xlu0 %960
    %962 = vset.pattern.permute.xlu0 0
    %963 = vperm.xlu0 %962, %v162
    %v964 = vpop.permute.xlu0 %963
    %965 = vset.pattern.permute.xlu0 0
    %966 = vperm.xlu0 %965, %v163
    %v967 = vpop.permute.xlu0 %966
    %968 = vset.pattern.permute.xlu0 0
    %969 = vperm.xlu0 %968, %v164
    %v970 = vpop.permute.xlu0 %969
    %971 = vset.pattern.permute.xlu0 0
    %972 = vperm.xlu0 %971, %v165
    %v973 = vpop.permute.xlu0 %972
    %974 = vset.pattern.permute.xlu0 0
    %975 = vperm.xlu0 %974, %v166
    %v976 = vpop.permute.xlu0 %975
    %977 = vset.pattern.permute.xlu0 0
    %978 = vperm.xlu0 %977, %v167
    %v979 = vpop.permute.xlu0 %978
    %980 = vset.pattern.permute.xlu0 0
    %981 = vperm.xlu0 %980, %v168
    %v982 = vpop.permute.xlu0 %981
    %983 = vset.pattern.permute.xlu0 0
    %984 = vperm.xlu0 %983, %v169
    %v985 = vpop.permute.xlu0 %984
    %986 = vset.pattern.permute.xlu0 0
    %987 = vperm.xlu0 %986, %v170
    %v988 = vpop.permute.xlu0 %987
    %989 = vset.pattern.permute.xlu0 0
    %990 = vperm.xlu0 %989, %v171
    %v991 = vpop.permute.xlu0 %990
    %vm992 = vcmp.eq.s32.totalorder %v946, %v943
    %vm993 = vcmp.eq.s32.totalorder %v949, %v943
    %vm994 = vcmp.eq.s32.totalorder %v952, %v943
    %vm995 = vcmp.eq.s32.totalorder %v955, %v943
    %vm996 = vcmp.eq.s32.totalorder %v958, %v943
    %vm997 = vcmp.eq.s32.totalorder %v961, %v943
    %vm998 = vcmp.eq.s32.totalorder %v964, %v943
    %vm999 = vcmp.eq.s32.totalorder %v967, %v943
    %vm1000 = vcmp.eq.s32.totalorder %v970, %v943
    %vm1001 = vcmp.eq.s32.totalorder %v973, %v943
    %vm1002 = vcmp.eq.s32.totalorder %v976, %v943
    %vm1003 = vcmp.eq.s32.totalorder %v979, %v943
    %vm1004 = vcmp.eq.s32.totalorder %v982, %v943
    %vm1005 = vcmp.eq.s32.totalorder %v985, %v943
    %vm1006 = vcmp.eq.s32.totalorder %v988, %v943
    %vm1007 = vcmp.eq.s32.totalorder %v991, %v943
    %v1008 = vsel %vm992, 1, 0
    %v1009 = vsel %vm993, 1, 0
    %v1010 = vsel %vm994, 1, 0
    %v1011 = vsel %vm995, 1, 0
    %v1012 = vsel %vm996, 1, 0
    %v1013 = vsel %vm997, 1, 0
    %v1014 = vsel %vm998, 1, 0
    %v1015 = vsel %vm999, 1, 0
    %v1016 = vsel %vm1000, 1, 0
    %v1017 = vsel %vm1001, 1, 0
    %v1018 = vsel %vm1002, 1, 0
    %v1019 = vsel %vm1003, 1, 0
    %v1020 = vsel %vm1004, 1, 0
    %v1021 = vsel %vm1005, 1, 0
    %v1022 = vsel %vm1006, 1, 0
    %v1023 = vsel %vm1007, 1, 0
    %v1024 = vcvt.s32.f32 %v1008
    %v1025 = vcvt.s32.f32 %v1009
    %v1026 = vcvt.s32.f32 %v1010
    %v1027 = vcvt.s32.f32 %v1011
    %v1028 = vcvt.s32.f32 %v1012
    %v1029 = vcvt.s32.f32 %v1013
    %v1030 = vcvt.s32.f32 %v1014
    %v1031 = vcvt.s32.f32 %v1015
    %v1032 = vcvt.s32.f32 %v1016
    %v1033 = vcvt.s32.f32 %v1017
    %v1034 = vcvt.s32.f32 %v1018
    %v1035 = vcvt.s32.f32 %v1019
    %v1036 = vcvt.s32.f32 %v1020
    %v1037 = vcvt.s32.f32 %v1021
    %v1038 = vcvt.s32.f32 %v1022
    %v1039 = vcvt.s32.f32 %v1023
    %v1041 = vsel %vm234, %v1024, 0
    %v1044 = vsel %vm234, %v1025, 0
    %v1047 = vsel %vm234, %v1026, 0
    %v1050 = vsel %vm234, %v1027, 0
    %v1053 = vsel %vm234, %v1028, 0
    %v1056 = vsel %vm234, %v1029, 0
    %v1059 = vsel %vm234, %v1030, 0
    %v1062 = vsel %vm234, %v1031, 0
    %v1065 = vsel %vm234, %v1032, 0
    %v1068 = vsel %vm234, %v1033, 0
    %v1071 = vsel %vm234, %v1034, 0
    %v1074 = vsel %vm234, %v1035, 0
    %v1077 = vsel %vm234, %v1036, 0
    %v1080 = vsel %vm234, %v1037, 0
    %v1083 = vsel %vm234, %v1038, 0
    %v1086 = vsel %vm234, %v1039, 0
    %1088 = vmatpush.msra.mxu0 0.0
    %1089 = vmatpush.msra.mxu0 0.0
    %1090 = vmatpush.msra.mxu0 0.0
    %1091 = vmatpush.msra.mxu0 0.0
    %1092 = vmatpush.msra.mxu0 0.0
    %1093 = vmatpush.msra.mxu0 0.0
    %1094 = vmatpush.msra.mxu0 0.0
    %1095 = vmatpush.msra.mxu0 0.0
    %1096 = vmatpush.msra.mxu0 0.0
    %1097 = vmatpush.msra.mxu0 0.0
    %1098 = vmatpush.msra.mxu0 0.0
    %1099 = vmatpush.msra.mxu0 0.0
    %1100 = vmatpush.msra.mxu0 0.0
    %1101 = vmatpush.msra.mxu0 0.0
    %1102 = vmatpush.msra.mxu0 %v883
    %1103 = vmatpush.msra.mxu0 %v882
    %1104 = vmatmul.f32.gmra.mxu0 %v1041
    %v1105 = vpop.f32.mrf.mxu0
    %v1106 = vadd.f32 0.0, %v1105
    %1107 = vmatmul.f32.gmra.mxu0 %v1044
    %v1108 = vpop.f32.mrf.mxu0
    %v1109 = vadd.f32 0.0, %v1108
    %1110 = vmatmul.f32.gmra.mxu0 %v1047
    %v1111 = vpop.f32.mrf.mxu0
    %v1112 = vadd.f32 0.0, %v1111
    %1113 = vmatmul.f32.gmra.mxu0 %v1050
    %v1114 = vpop.f32.mrf.mxu0
    %v1115 = vadd.f32 0.0, %v1114
    %1116 = vmatmul.f32.gmra.mxu0 %v1053
    %v1117 = vpop.f32.mrf.mxu0
    %v1118 = vadd.f32 0.0, %v1117
    %1119 = vmatmul.f32.gmra.mxu0 %v1056
    %v1120 = vpop.f32.mrf.mxu0
    %v1121 = vadd.f32 0.0, %v1120
    %1122 = vmatmul.f32.gmra.mxu0 %v1059
    %v1123 = vpop.f32.mrf.mxu0
    %v1124 = vadd.f32 0.0, %v1123
    %1125 = vmatmul.f32.gmra.mxu0 %v1062
    %v1126 = vpop.f32.mrf.mxu0
    %v1127 = vadd.f32 0.0, %v1126
    %1128 = vmatmul.f32.gmra.mxu0 %v1065
    %v1129 = vpop.f32.mrf.mxu0
    %v1130 = vadd.f32 0.0, %v1129
    %1131 = vmatmul.f32.gmra.mxu0 %v1068
    %v1132 = vpop.f32.mrf.mxu0
    %v1133 = vadd.f32 0.0, %v1132
    %1134 = vmatmul.f32.gmra.mxu0 %v1071
    %v1135 = vpop.f32.mrf.mxu0
    %v1136 = vadd.f32 0.0, %v1135
    %1137 = vmatmul.f32.gmra.mxu0 %v1074
    %v1138 = vpop.f32.mrf.mxu0
    %v1139 = vadd.f32 0.0, %v1138
    %1140 = vmatmul.f32.gmra.mxu0 %v1077
    %v1141 = vpop.f32.mrf.mxu0
    %v1142 = vadd.f32 0.0, %v1141
    %1143 = vmatmul.f32.gmra.mxu0 %v1080
    %v1144 = vpop.f32.mrf.mxu0
    %v1145 = vadd.f32 0.0, %v1144
    %1146 = vmatmul.f32.gmra.mxu0 %v1083
    %v1147 = vpop.f32.mrf.mxu0
    %v1148 = vadd.f32 0.0, %v1147
    %1149 = vmatmul.f32.gmra.mxu0 %v1086
    %v1150 = vpop.f32.mrf.mxu0
    %v1151 = vadd.f32 0.0, %v1150
    %1152 = vdwg.mxu0
    %1153 = vset.pattern.permute.xlu0 0
    %1154 = vperm.xlu0 %1153, %v172
    %v1155 = vpop.permute.xlu0 %1154
    %1156 = vset.pattern.permute.xlu0 0
    %1157 = vperm.xlu0 %1156, %v173
    %v1158 = vpop.permute.xlu0 %1157
    %1159 = vset.pattern.permute.xlu0 0
    %1160 = vperm.xlu0 %1159, %v174
    %v1161 = vpop.permute.xlu0 %1160
    %1162 = vset.pattern.permute.xlu0 0
    %1163 = vperm.xlu0 %1162, %v175
    %v1164 = vpop.permute.xlu0 %1163
    %1165 = vset.pattern.permute.xlu0 0
    %1166 = vperm.xlu0 %1165, %v176
    %v1167 = vpop.permute.xlu0 %1166
    %1168 = vset.pattern.permute.xlu0 0
    %1169 = vperm.xlu0 %1168, %v177
    %v1170 = vpop.permute.xlu0 %1169
    %1171 = vset.pattern.permute.xlu0 0
    %1172 = vperm.xlu0 %1171, %v178
    %v1173 = vpop.permute.xlu0 %1172
    %1174 = vset.pattern.permute.xlu0 0
    %1175 = vperm.xlu0 %1174, %v179
    %v1176 = vpop.permute.xlu0 %1175
    %1177 = vset.pattern.permute.xlu0 0
    %1178 = vperm.xlu0 %1177, %v180
    %v1179 = vpop.permute.xlu0 %1178
    %1180 = vset.pattern.permute.xlu0 0
    %1181 = vperm.xlu0 %1180, %v181
    %v1182 = vpop.permute.xlu0 %1181
    %1183 = vset.pattern.permute.xlu0 0
    %1184 = vperm.xlu0 %1183, %v182
    %v1185 = vpop.permute.xlu0 %1184
    %1186 = vset.pattern.permute.xlu0 0
    %1187 = vperm.xlu0 %1186, %v183
    %v1188 = vpop.permute.xlu0 %1187
    %1189 = vset.pattern.permute.xlu0 0
    %1190 = vperm.xlu0 %1189, %v184
    %v1191 = vpop.permute.xlu0 %1190
    %1192 = vset.pattern.permute.xlu0 0
    %1193 = vperm.xlu0 %1192, %v185
    %v1194 = vpop.permute.xlu0 %1193
    %1195 = vset.pattern.permute.xlu0 0
    %1196 = vperm.xlu0 %1195, %v186
    %v1197 = vpop.permute.xlu0 %1196
    %1198 = vset.pattern.permute.xlu0 0
    %1199 = vperm.xlu0 %1198, %v187
    %v1200 = vpop.permute.xlu0 %1199
    %vm1201 = vcmp.eq.s32.totalorder %v1155, %v943
    %vm1202 = vcmp.eq.s32.totalorder %v1158, %v943
    %vm1203 = vcmp.eq.s32.totalorder %v1161, %v943
    %vm1204 = vcmp.eq.s32.totalorder %v1164, %v943
    %vm1205 = vcmp.eq.s32.totalorder %v1167, %v943
    %vm1206 = vcmp.eq.s32.totalorder %v1170, %v943
    %vm1207 = vcmp.eq.s32.totalorder %v1173, %v943
    %vm1208 = vcmp.eq.s32.totalorder %v1176, %v943
    %vm1209 = vcmp.eq.s32.totalorder %v1179, %v943
    %vm1210 = vcmp.eq.s32.totalorder %v1182, %v943
    %vm1211 = vcmp.eq.s32.totalorder %v1185, %v943
    %vm1212 = vcmp.eq.s32.totalorder %v1188, %v943
    %vm1213 = vcmp.eq.s32.totalorder %v1191, %v943
    %vm1214 = vcmp.eq.s32.totalorder %v1194, %v943
    %vm1215 = vcmp.eq.s32.totalorder %v1197, %v943
    %vm1216 = vcmp.eq.s32.totalorder %v1200, %v943
    %v1217 = vsel %vm1201, 1, 0
    %v1218 = vsel %vm1202, 1, 0
    %v1219 = vsel %vm1203, 1, 0
    %v1220 = vsel %vm1204, 1, 0
    %v1221 = vsel %vm1205, 1, 0
    %v1222 = vsel %vm1206, 1, 0
    %v1223 = vsel %vm1207, 1, 0
    %v1224 = vsel %vm1208, 1, 0
    %v1225 = vsel %vm1209, 1, 0
    %v1226 = vsel %vm1210, 1, 0
    %v1227 = vsel %vm1211, 1, 0
    %v1228 = vsel %vm1212, 1, 0
    %v1229 = vsel %vm1213, 1, 0
    %v1230 = vsel %vm1214, 1, 0
    %v1231 = vsel %vm1215, 1, 0
    %v1232 = vsel %vm1216, 1, 0
    %v1233 = vcvt.s32.f32 %v1217
    %v1234 = vcvt.s32.f32 %v1218
    %v1235 = vcvt.s32.f32 %v1219
    %v1236 = vcvt.s32.f32 %v1220
    %v1237 = vcvt.s32.f32 %v1221
    %v1238 = vcvt.s32.f32 %v1222
    %v1239 = vcvt.s32.f32 %v1223
    %v1240 = vcvt.s32.f32 %v1224
    %v1241 = vcvt.s32.f32 %v1225
    %v1242 = vcvt.s32.f32 %v1226
    %v1243 = vcvt.s32.f32 %v1227
    %v1244 = vcvt.s32.f32 %v1228
    %v1245 = vcvt.s32.f32 %v1229
    %v1246 = vcvt.s32.f32 %v1230
    %v1247 = vcvt.s32.f32 %v1231
    %v1248 = vcvt.s32.f32 %v1232
    %v1250 = vsel %vm302, %v1233, 0
    %v1253 = vsel %vm302, %v1234, 0
    %v1256 = vsel %vm302, %v1235, 0
    %v1259 = vsel %vm302, %v1236, 0
    %v1262 = vsel %vm302, %v1237, 0
    %v1265 = vsel %vm302, %v1238, 0
    %v1268 = vsel %vm302, %v1239, 0
    %v1271 = vsel %vm302, %v1240, 0
    %v1274 = vsel %vm302, %v1241, 0
    %v1277 = vsel %vm302, %v1242, 0
    %v1280 = vsel %vm302, %v1243, 0
    %v1283 = vsel %vm302, %v1244, 0
    %v1286 = vsel %vm302, %v1245, 0
    %v1289 = vsel %vm302, %v1246, 0
    %v1292 = vsel %vm302, %v1247, 0
    %v1295 = vsel %vm302, %v1248, 0
    %1297 = vmatpush.msra.mxu0 0.0
    %1298 = vmatpush.msra.mxu0 0.0
    %1299 = vmatpush.msra.mxu0 0.0
    %1300 = vmatpush.msra.mxu0 0.0
    %1301 = vmatpush.msra.mxu0 0.0
    %1302 = vmatpush.msra.mxu0 0.0
    %1303 = vmatpush.msra.mxu0 0.0
    %1304 = vmatpush.msra.mxu0 0.0
    %1305 = vmatpush.msra.mxu0 0.0
    %1306 = vmatpush.msra.mxu0 0.0
    %1307 = vmatpush.msra.mxu0 0.0
    %1308 = vmatpush.msra.mxu0 0.0
    %1309 = vmatpush.msra.mxu0 0.0
    %1310 = vmatpush.msra.mxu0 %v941
    %1311 = vmatpush.msra.mxu0 %v940
    %1312 = vmatpush.msra.mxu0 %v939
    %1313 = vmatmul.f32.gmra.mxu0 %v1250
    %v1314 = vpop.f32.mrf.mxu0
    %v1315 = vadd.f32 0.0, %v1314
    %1316 = vmatmul.f32.gmra.mxu0 %v1253
    %v1317 = vpop.f32.mrf.mxu0
    %v1318 = vadd.f32 0.0, %v1317
    %1319 = vmatmul.f32.gmra.mxu0 %v1256
    %v1320 = vpop.f32.mrf.mxu0
    %v1321 = vadd.f32 0.0, %v1320
    %1322 = vmatmul.f32.gmra.mxu0 %v1259
    %v1323 = vpop.f32.mrf.mxu0
    %v1324 = vadd.f32 0.0, %v1323
    %1325 = vmatmul.f32.gmra.mxu0 %v1262
    %v1326 = vpop.f32.mrf.mxu0
    %v1327 = vadd.f32 0.0, %v1326
    %1328 = vmatmul.f32.gmra.mxu0 %v1265
    %v1329 = vpop.f32.mrf.mxu0
    %v1330 = vadd.f32 0.0, %v1329
    %1331 = vmatmul.f32.gmra.mxu0 %v1268
    %v1332 = vpop.f32.mrf.mxu0
    %v1333 = vadd.f32 0.0, %v1332
    %1334 = vmatmul.f32.gmra.mxu0 %v1271
    %v1335 = vpop.f32.mrf.mxu0
    %v1336 = vadd.f32 0.0, %v1335
    %1337 = vmatmul.f32.gmra.mxu0 %v1274
    %v1338 = vpop.f32.mrf.mxu0
    %v1339 = vadd.f32 0.0, %v1338
    %1340 = vmatmul.f32.gmra.mxu0 %v1277
    %v1341 = vpop.f32.mrf.mxu0
    %v1342 = vadd.f32 0.0, %v1341
    %1343 = vmatmul.f32.gmra.mxu0 %v1280
    %v1344 = vpop.f32.mrf.mxu0
    %v1345 = vadd.f32 0.0, %v1344
    %1346 = vmatmul.f32.gmra.mxu0 %v1283
    %v1347 = vpop.f32.mrf.mxu0
    %v1348 = vadd.f32 0.0, %v1347
    %1349 = vmatmul.f32.gmra.mxu0 %v1286
    %v1350 = vpop.f32.mrf.mxu0
    %v1351 = vadd.f32 0.0, %v1350
    %1352 = vmatmul.f32.gmra.mxu0 %v1289
    %v1353 = vpop.f32.mrf.mxu0
    %v1354 = vadd.f32 0.0, %v1353
    %1355 = vmatmul.f32.gmra.mxu0 %v1292
    %v1356 = vpop.f32.mrf.mxu0
    %v1357 = vadd.f32 0.0, %v1356
    %1358 = vmatmul.f32.gmra.mxu0 %v1295
    %v1359 = vpop.f32.mrf.mxu0
    %v1360 = vadd.f32 0.0, %v1359
    %1361 = vdwg.mxu0
    %1362 = vset.pattern.permute.xlu0 0
    %1363 = vperm.xlu0 %1362, %v188
    %v1364 = vpop.permute.xlu0 %1363
    %1365 = vset.pattern.permute.xlu0 0
    %1366 = vperm.xlu0 %1365, %v189
    %v1367 = vpop.permute.xlu0 %1366
    %1368 = vset.pattern.permute.xlu0 0
    %1369 = vperm.xlu0 %1368, %v190
    %v1370 = vpop.permute.xlu0 %1369
    %1371 = vset.pattern.permute.xlu0 0
    %1372 = vperm.xlu0 %1371, %v191
    %v1373 = vpop.permute.xlu0 %1372
    %1374 = vset.pattern.permute.xlu0 0
    %1375 = vperm.xlu0 %1374, %v192
    %v1376 = vpop.permute.xlu0 %1375
    %1377 = vset.pattern.permute.xlu0 0
    %1378 = vperm.xlu0 %1377, %v193
    %v1379 = vpop.permute.xlu0 %1378
    %1380 = vset.pattern.permute.xlu0 0
    %1381 = vperm.xlu0 %1380, %v194
    %v1382 = vpop.permute.xlu0 %1381
    %1383 = vset.pattern.permute.xlu0 0
    %1384 = vperm.xlu0 %1383, %v195
    %v1385 = vpop.permute.xlu0 %1384
    %1386 = vset.pattern.permute.xlu0 0
    %1387 = vperm.xlu0 %1386, %v196
    %v1388 = vpop.permute.xlu0 %1387
    %1389 = vset.pattern.permute.xlu0 0
    %1390 = vperm.xlu0 %1389, %v197
    %v1391 = vpop.permute.xlu0 %1390
    %1392 = vset.pattern.permute.xlu0 0
    %1393 = vperm.xlu0 %1392, %v198
    %v1394 = vpop.permute.xlu0 %1393
    %1395 = vset.pattern.permute.xlu0 0
    %1396 = vperm.xlu0 %1395, %v199
    %v1397 = vpop.permute.xlu0 %1396
    %1398 = vset.pattern.permute.xlu0 0
    %1399 = vperm.xlu0 %1398, %v200
    %v1400 = vpop.permute.xlu0 %1399
    %1401 = vset.pattern.permute.xlu0 0
    %1402 = vperm.xlu0 %1401, %v201
    %v1403 = vpop.permute.xlu0 %1402
    %1404 = vset.pattern.permute.xlu0 0
    %1405 = vperm.xlu0 %1404, %v202
    %v1406 = vpop.permute.xlu0 %1405
    %1407 = vset.pattern.permute.xlu0 0
    %1408 = vperm.xlu0 %1407, %v203
    %v1409 = vpop.permute.xlu0 %1408
    %vm1410 = vcmp.eq.s32.totalorder %v1364, %v943
    %vm1411 = vcmp.eq.s32.totalorder %v1367, %v943
    %vm1412 = vcmp.eq.s32.totalorder %v1370, %v943
    %vm1413 = vcmp.eq.s32.totalorder %v1373, %v943
    %vm1414 = vcmp.eq.s32.totalorder %v1376, %v943
    %vm1415 = vcmp.eq.s32.totalorder %v1379, %v943
    %vm1416 = vcmp.eq.s32.totalorder %v1382, %v943
    %vm1417 = vcmp.eq.s32.totalorder %v1385, %v943
    %vm1418 = vcmp.eq.s32.totalorder %v1388, %v943
    %vm1419 = vcmp.eq.s32.totalorder %v1391, %v943
    %vm1420 = vcmp.eq.s32.totalorder %v1394, %v943
    %vm1421 = vcmp.eq.s32.totalorder %v1397, %v943
    %vm1422 = vcmp.eq.s32.totalorder %v1400, %v943
    %vm1423 = vcmp.eq.s32.totalorder %v1403, %v943
    %vm1424 = vcmp.eq.s32.totalorder %v1406, %v943
    %vm1425 = vcmp.eq.s32.totalorder %v1409, %v943
    %v1426 = vsel %vm1410, 1, 0
    %v1427 = vsel %vm1411, 1, 0
    %v1428 = vsel %vm1412, 1, 0
    %v1429 = vsel %vm1413, 1, 0
    %v1430 = vsel %vm1414, 1, 0
    %v1431 = vsel %vm1415, 1, 0
    %v1432 = vsel %vm1416, 1, 0
    %v1433 = vsel %vm1417, 1, 0
    %v1434 = vsel %vm1418, 1, 0
    %v1435 = vsel %vm1419, 1, 0
    %v1436 = vsel %vm1420, 1, 0
    %v1437 = vsel %vm1421, 1, 0
    %v1438 = vsel %vm1422, 1, 0
    %v1439 = vsel %vm1423, 1, 0
    %v1440 = vsel %vm1424, 1, 0
    %v1441 = vsel %vm1425, 1, 0
    %v1442 = vcvt.s32.f32 %v1426
    %v1443 = vcvt.s32.f32 %v1427
    %v1444 = vcvt.s32.f32 %v1428
    %v1445 = vcvt.s32.f32 %v1429
    %v1446 = vcvt.s32.f32 %v1430
    %v1447 = vcvt.s32.f32 %v1431
    %v1448 = vcvt.s32.f32 %v1432
    %v1449 = vcvt.s32.f32 %v1433
    %v1450 = vcvt.s32.f32 %v1434
    %v1451 = vcvt.s32.f32 %v1435
    %v1452 = vcvt.s32.f32 %v1436
    %v1453 = vcvt.s32.f32 %v1437
    %v1454 = vcvt.s32.f32 %v1438
    %v1455 = vcvt.s32.f32 %v1439
    %v1456 = vcvt.s32.f32 %v1440
    %v1457 = vcvt.s32.f32 %v1441
    %v1459 = vsel %vm302, %v1442, 0
    %v1462 = vsel %vm302, %v1443, 0
    %v1465 = vsel %vm302, %v1444, 0
    %v1468 = vsel %vm302, %v1445, 0
    %v1471 = vsel %vm302, %v1446, 0
    %v1474 = vsel %vm302, %v1447, 0
    %v1477 = vsel %vm302, %v1448, 0
    %v1480 = vsel %vm302, %v1449, 0
    %v1483 = vsel %vm302, %v1450, 0
    %v1486 = vsel %vm302, %v1451, 0
    %v1489 = vsel %vm302, %v1452, 0
    %v1492 = vsel %vm302, %v1453, 0
    %v1495 = vsel %vm302, %v1454, 0
    %v1498 = vsel %vm302, %v1455, 0
    %v1501 = vsel %vm302, %v1456, 0
    %v1504 = vsel %vm302, %v1457, 0
    %1506 = vmatpush.msra.mxu0 0.0
    %1507 = vmatpush.msra.mxu0 0.0
    %1508 = vmatpush.msra.mxu0 0.0
    %1509 = vmatpush.msra.mxu0 0.0
    %1510 = vmatpush.msra.mxu0 0.0
    %1511 = vmatpush.msra.mxu0 0.0
    %1512 = vmatpush.msra.mxu0 0.0
    %1513 = vmatpush.msra.mxu0 0.0
    %1514 = vmatpush.msra.mxu0 0.0
    %1515 = vmatpush.msra.mxu0 0.0
    %1516 = vmatpush.msra.mxu0 0.0
    %1517 = vmatpush.msra.mxu0 0.0
    %1518 = vmatpush.msra.mxu0 0.0
    %1519 = vmatpush.msra.mxu0 %v941
    %1520 = vmatpush.msra.mxu0 %v940
    %1521 = vmatpush.msra.mxu0 %v939
    %1522 = vmatmul.f32.gmra.mxu0 %v1459
    %v1523 = vpop.f32.mrf.mxu0
    %v1524 = vadd.f32 0.0, %v1523
    %1525 = vmatmul.f32.gmra.mxu0 %v1462
    %v1526 = vpop.f32.mrf.mxu0
    %v1527 = vadd.f32 0.0, %v1526
    %1528 = vmatmul.f32.gmra.mxu0 %v1465
    %v1529 = vpop.f32.mrf.mxu0
    %v1530 = vadd.f32 0.0, %v1529
    %1531 = vmatmul.f32.gmra.mxu0 %v1468
    %v1532 = vpop.f32.mrf.mxu0
    %v1533 = vadd.f32 0.0, %v1532
    %1534 = vmatmul.f32.gmra.mxu0 %v1471
    %v1535 = vpop.f32.mrf.mxu0
    %v1536 = vadd.f32 0.0, %v1535
    %1537 = vmatmul.f32.gmra.mxu0 %v1474
    %v1538 = vpop.f32.mrf.mxu0
    %v1539 = vadd.f32 0.0, %v1538
    %1540 = vmatmul.f32.gmra.mxu0 %v1477
    %v1541 = vpop.f32.mrf.mxu0
    %v1542 = vadd.f32 0.0, %v1541
    %1543 = vmatmul.f32.gmra.mxu0 %v1480
    %v1544 = vpop.f32.mrf.mxu0
    %v1545 = vadd.f32 0.0, %v1544
    %1546 = vmatmul.f32.gmra.mxu0 %v1483
    %v1547 = vpop.f32.mrf.mxu0
    %v1548 = vadd.f32 0.0, %v1547
    %1549 = vmatmul.f32.gmra.mxu0 %v1486
    %v1550 = vpop.f32.mrf.mxu0
    %v1551 = vadd.f32 0.0, %v1550
    %1552 = vmatmul.f32.gmra.mxu0 %v1489
    %v1553 = vpop.f32.mrf.mxu0
    %v1554 = vadd.f32 0.0, %v1553
    %1555 = vmatmul.f32.gmra.mxu0 %v1492
    %v1556 = vpop.f32.mrf.mxu0
    %v1557 = vadd.f32 0.0, %v1556
    %1558 = vmatmul.f32.gmra.mxu0 %v1495
    %v1559 = vpop.f32.mrf.mxu0
    %v1560 = vadd.f32 0.0, %v1559
    %1561 = vmatmul.f32.gmra.mxu0 %v1498
    %v1562 = vpop.f32.mrf.mxu0
    %v1563 = vadd.f32 0.0, %v1562
    %1564 = vmatmul.f32.gmra.mxu0 %v1501
    %v1565 = vpop.f32.mrf.mxu0
    %v1566 = vadd.f32 0.0, %v1565
    %1567 = vmatmul.f32.gmra.mxu0 %v1504
    %v1568 = vpop.f32.mrf.mxu0
    %v1569 = vadd.f32 0.0, %v1568
    %1570 = vdwg.mxu0
    %v1572 = vsel %vm464, %v1106, 0
    %v1575 = vsel %vm464, %v1109, 0
    %v1578 = vsel %vm464, %v1112, 0
    %v1581 = vsel %vm464, %v1115, 0
    %v1584 = vsel %vm464, %v1118, 0
    %v1587 = vsel %vm464, %v1121, 0
    %v1590 = vsel %vm464, %v1124, 0
    %v1593 = vsel %vm464, %v1127, 0
    %v1596 = vsel %vm464, %v1130, 0
    %v1599 = vsel %vm464, %v1133, 0
    %v1602 = vsel %vm464, %v1136, 0
    %v1605 = vsel %vm464, %v1139, 0
    %v1608 = vsel %vm464, %v1142, 0
    %v1611 = vsel %vm464, %v1145, 0
    %v1614 = vsel %vm464, %v1148, 0
    %v1617 = vsel %vm464, %v1151, 0
    %1619 = vmatpush.msra.mxu0 0.0
    %1620 = vmatpush.msra.mxu0 0.0
    %1621 = vmatpush.msra.mxu0 0.0
    %1622 = vmatpush.msra.mxu0 0.0
    %1623 = vmatpush.msra.mxu0 0.0
    %1624 = vmatpush.msra.mxu0 0.0
    %1625 = vmatpush.msra.mxu0 0.0
    %1626 = vmatpush.msra.mxu0 0.0
    %1627 = vmatpush.msra.mxu0 0.0
    %1628 = vmatpush.msra.mxu0 0.0
    %1629 = vmatpush.msra.mxu0 0.0
    %1630 = vmatpush.msra.mxu0 0.0
    %1631 = vmatpush.msra.mxu0 %v155
    %1632 = vmatpush.msra.mxu0 %v154
    %1633 = vmatpush.msra.mxu0 %v153
    %1634 = vmatpush.msra.mxu0 %v152
    %1635 = vmatmul.f32.gmra.mxu0 %v1572
    %v1636 = vpop.f32.mrf.mxu0
    %v1637 = vadd.f32 0.0, %v1636
    %1638 = vmatmul.f32.gmra.mxu0 %v1575
    %v1639 = vpop.f32.mrf.mxu0
    %v1640 = vadd.f32 0.0, %v1639
    %1641 = vmatmul.f32.gmra.mxu0 %v1578
    %v1642 = vpop.f32.mrf.mxu0
    %v1643 = vadd.f32 0.0, %v1642
    %1644 = vmatmul.f32.gmra.mxu0 %v1581
    %v1645 = vpop.f32.mrf.mxu0
    %v1646 = vadd.f32 0.0, %v1645
    %1647 = vmatmul.f32.gmra.mxu0 %v1584
    %v1648 = vpop.f32.mrf.mxu0
    %v1649 = vadd.f32 0.0, %v1648
    %1650 = vmatmul.f32.gmra.mxu0 %v1587
    %v1651 = vpop.f32.mrf.mxu0
    %v1652 = vadd.f32 0.0, %v1651
    %1653 = vmatmul.f32.gmra.mxu0 %v1590
    %v1654 = vpop.f32.mrf.mxu0
    %v1655 = vadd.f32 0.0, %v1654
    %1656 = vmatmul.f32.gmra.mxu0 %v1593
    %v1657 = vpop.f32.mrf.mxu0
    %v1658 = vadd.f32 0.0, %v1657
    %1659 = vmatmul.f32.gmra.mxu0 %v1596
    %v1660 = vpop.f32.mrf.mxu0
    %v1661 = vadd.f32 0.0, %v1660
    %1662 = vmatmul.f32.gmra.mxu0 %v1599
    %v1663 = vpop.f32.mrf.mxu0
    %v1664 = vadd.f32 0.0, %v1663
    %1665 = vmatmul.f32.gmra.mxu0 %v1602
    %v1666 = vpop.f32.mrf.mxu0
    %v1667 = vadd.f32 0.0, %v1666
    %1668 = vmatmul.f32.gmra.mxu0 %v1605
    %v1669 = vpop.f32.mrf.mxu0
    %v1670 = vadd.f32 0.0, %v1669
    %1671 = vmatmul.f32.gmra.mxu0 %v1608
    %v1672 = vpop.f32.mrf.mxu0
    %v1673 = vadd.f32 0.0, %v1672
    %1674 = vmatmul.f32.gmra.mxu0 %v1611
    %v1675 = vpop.f32.mrf.mxu0
    %v1676 = vadd.f32 0.0, %v1675
    %1677 = vmatmul.f32.gmra.mxu0 %v1614
    %v1678 = vpop.f32.mrf.mxu0
    %v1679 = vadd.f32 0.0, %v1678
    %1680 = vmatmul.f32.gmra.mxu0 %v1617
    %v1681 = vpop.f32.mrf.mxu0
    %v1682 = vadd.f32 0.0, %v1681
    %1683 = vdwg.mxu0
    %v1685 = vsel %vm464, %v1637, 0
    %v1688 = vsel %vm464, %v1640, 0
    %v1691 = vsel %vm464, %v1643, 0
    %v1694 = vsel %vm464, %v1646, 0
    %v1697 = vsel %vm464, %v1649, 0
    %v1700 = vsel %vm464, %v1652, 0
    %v1703 = vsel %vm464, %v1655, 0
    %v1706 = vsel %vm464, %v1658, 0
    %v1709 = vsel %vm464, %v1661, 0
    %v1712 = vsel %vm464, %v1664, 0
    %v1715 = vsel %vm464, %v1667, 0
    %v1718 = vsel %vm464, %v1670, 0
    %v1721 = vsel %vm464, %v1673, 0
    %v1724 = vsel %vm464, %v1676, 0
    %v1727 = vsel %vm464, %v1679, 0
    %v1730 = vsel %vm464, %v1682, 0
    %v1733 = vsel %vm464, %v1315, 0
    %v1736 = vsel %vm464, %v1318, 0
    %v1739 = vsel %vm464, %v1321, 0
    %v1742 = vsel %vm464, %v1324, 0
    %v1745 = vsel %vm464, %v1327, 0
    %v1748 = vsel %vm464, %v1330, 0
    %v1751 = vsel %vm464, %v1333, 0
    %v1754 = vsel %vm464, %v1336, 0
    %v1757 = vsel %vm464, %v1339, 0
    %v1760 = vsel %vm464, %v1342, 0
    %v1763 = vsel %vm464, %v1345, 0
    %v1766 = vsel %vm464, %v1348, 0
    %v1769 = vsel %vm464, %v1351, 0
    %v1772 = vsel %vm464, %v1354, 0
    %v1775 = vsel %vm464, %v1357, 0
    %v1778 = vsel %vm464, %v1360, 0
    %1780 = vmatpush.xpose.msra.mxu0 %v1778
    %1781 = vmatpush.xpose.msra.mxu0 %v1775
    %1782 = vmatpush.xpose.msra.mxu0 %v1772
    %1783 = vmatpush.xpose.msra.mxu0 %v1769
    %1784 = vmatpush.xpose.msra.mxu0 %v1766
    %1785 = vmatpush.xpose.msra.mxu0 %v1763
    %1786 = vmatpush.xpose.msra.mxu0 %v1760
    %1787 = vmatpush.xpose.msra.mxu0 %v1757
    %1788 = vmatpush.xpose.msra.mxu0 %v1754
    %1789 = vmatpush.xpose.msra.mxu0 %v1751
    %1790 = vmatpush.xpose.msra.mxu0 %v1748
    %1791 = vmatpush.xpose.msra.mxu0 %v1745
    %1792 = vmatpush.xpose.msra.mxu0 %v1742
    %1793 = vmatpush.xpose.msra.mxu0 %v1739
    %1794 = vmatpush.xpose.msra.mxu0 %v1736
    %1795 = vmatpush.xpose.msra.mxu0 %v1733
    %1796 = vmatmul.f32.gmra.mxu0 %v1685
    %v1797 = vpop.f32.mrf.mxu0
    %v1798 = vadd.f32 0.0, %v1797
    %1799 = vmatmul.f32.gmra.mxu0 %v1688
    %v1800 = vpop.f32.mrf.mxu0
    %v1801 = vadd.f32 0.0, %v1800
    %1802 = vmatmul.f32.gmra.mxu0 %v1691
    %v1803 = vpop.f32.mrf.mxu0
    %v1804 = vadd.f32 0.0, %v1803
    %1805 = vmatmul.f32.gmra.mxu0 %v1694
    %v1806 = vpop.f32.mrf.mxu0
    %v1807 = vadd.f32 0.0, %v1806
    %1808 = vmatmul.f32.gmra.mxu0 %v1697
    %v1809 = vpop.f32.mrf.mxu0
    %v1810 = vadd.f32 0.0, %v1809
    %1811 = vmatmul.f32.gmra.mxu0 %v1700
    %v1812 = vpop.f32.mrf.mxu0
    %v1813 = vadd.f32 0.0, %v1812
    %1814 = vmatmul.f32.gmra.mxu0 %v1703
    %v1815 = vpop.f32.mrf.mxu0
    %v1816 = vadd.f32 0.0, %v1815
    %1817 = vmatmul.f32.gmra.mxu0 %v1706
    %v1818 = vpop.f32.mrf.mxu0
    %v1819 = vadd.f32 0.0, %v1818
    %1820 = vmatmul.f32.gmra.mxu0 %v1709
    %v1821 = vpop.f32.mrf.mxu0
    %v1822 = vadd.f32 0.0, %v1821
    %1823 = vmatmul.f32.gmra.mxu0 %v1712
    %v1824 = vpop.f32.mrf.mxu0
    %v1825 = vadd.f32 0.0, %v1824
    %1826 = vmatmul.f32.gmra.mxu0 %v1715
    %v1827 = vpop.f32.mrf.mxu0
    %v1828 = vadd.f32 0.0, %v1827
    %1829 = vmatmul.f32.gmra.mxu0 %v1718
    %v1830 = vpop.f32.mrf.mxu0
    %v1831 = vadd.f32 0.0, %v1830
    %1832 = vmatmul.f32.gmra.mxu0 %v1721
    %v1833 = vpop.f32.mrf.mxu0
    %v1834 = vadd.f32 0.0, %v1833
    %1835 = vmatmul.f32.gmra.mxu0 %v1724
    %v1836 = vpop.f32.mrf.mxu0
    %v1837 = vadd.f32 0.0, %v1836
    %1838 = vmatmul.f32.gmra.mxu0 %v1727
    %v1839 = vpop.f32.mrf.mxu0
    %v1840 = vadd.f32 0.0, %v1839
    %1841 = vmatmul.f32.gmra.mxu0 %v1730
    %v1842 = vpop.f32.mrf.mxu0
    %v1843 = vadd.f32 0.0, %v1842
    %1844 = vdwg.mxu0
    %v1846 = vsel %vm464, %v1524, 0
    %v1849 = vsel %vm464, %v1527, 0
    %v1852 = vsel %vm464, %v1530, 0
    %v1855 = vsel %vm464, %v1533, 0
    %v1858 = vsel %vm464, %v1536, 0
    %v1861 = vsel %vm464, %v1539, 0
    %v1864 = vsel %vm464, %v1542, 0
    %v1867 = vsel %vm464, %v1545, 0
    %v1870 = vsel %vm464, %v1548, 0
    %v1873 = vsel %vm464, %v1551, 0
    %v1876 = vsel %vm464, %v1554, 0
    %v1879 = vsel %vm464, %v1557, 0
    %v1882 = vsel %vm464, %v1560, 0
    %v1885 = vsel %vm464, %v1563, 0
    %v1888 = vsel %vm464, %v1566, 0
    %v1891 = vsel %vm464, %v1569, 0
    %1893 = vmatpush.xpose.msra.mxu0 %v1891
    %1894 = vmatpush.xpose.msra.mxu0 %v1888
    %1895 = vmatpush.xpose.msra.mxu0 %v1885
    %1896 = vmatpush.xpose.msra.mxu0 %v1882
    %1897 = vmatpush.xpose.msra.mxu0 %v1879
    %1898 = vmatpush.xpose.msra.mxu0 %v1876
    %1899 = vmatpush.xpose.msra.mxu0 %v1873
    %1900 = vmatpush.xpose.msra.mxu0 %v1870
    %1901 = vmatpush.xpose.msra.mxu0 %v1867
    %1902 = vmatpush.xpose.msra.mxu0 %v1864
    %1903 = vmatpush.xpose.msra.mxu0 %v1861
    %1904 = vmatpush.xpose.msra.mxu0 %v1858
    %1905 = vmatpush.xpose.msra.mxu0 %v1855
    %1906 = vmatpush.xpose.msra.mxu0 %v1852
    %1907 = vmatpush.xpose.msra.mxu0 %v1849
    %1908 = vmatpush.xpose.msra.mxu0 %v1846
    %1909 = vmatmul.f32.gmra.mxu0 %v1685
    %v1910 = vpop.f32.mrf.mxu0
    %v1911 = vadd.f32 0.0, %v1910
    %1912 = vmatmul.f32.gmra.mxu0 %v1688
    %v1913 = vpop.f32.mrf.mxu0
    %v1914 = vadd.f32 0.0, %v1913
    %1915 = vmatmul.f32.gmra.mxu0 %v1691
    %v1916 = vpop.f32.mrf.mxu0
    %v1917 = vadd.f32 0.0, %v1916
    %1918 = vmatmul.f32.gmra.mxu0 %v1694
    %v1919 = vpop.f32.mrf.mxu0
    %v1920 = vadd.f32 0.0, %v1919
    %1921 = vmatmul.f32.gmra.mxu0 %v1697
    %v1922 = vpop.f32.mrf.mxu0
    %v1923 = vadd.f32 0.0, %v1922
    %1924 = vmatmul.f32.gmra.mxu0 %v1700
    %v1925 = vpop.f32.mrf.mxu0
    %v1926 = vadd.f32 0.0, %v1925
    %1927 = vmatmul.f32.gmra.mxu0 %v1703
    %v1928 = vpop.f32.mrf.mxu0
    %v1929 = vadd.f32 0.0, %v1928
    %1930 = vmatmul.f32.gmra.mxu0 %v1706
    %v1931 = vpop.f32.mrf.mxu0
    %v1932 = vadd.f32 0.0, %v1931
    %1933 = vmatmul.f32.gmra.mxu0 %v1709
    %v1934 = vpop.f32.mrf.mxu0
    %v1935 = vadd.f32 0.0, %v1934
    %1936 = vmatmul.f32.gmra.mxu0 %v1712
    %v1937 = vpop.f32.mrf.mxu0
    %v1938 = vadd.f32 0.0, %v1937
    %1939 = vmatmul.f32.gmra.mxu0 %v1715
    %v1940 = vpop.f32.mrf.mxu0
    %v1941 = vadd.f32 0.0, %v1940
    %1942 = vmatmul.f32.gmra.mxu0 %v1718
    %v1943 = vpop.f32.mrf.mxu0
    %v1944 = vadd.f32 0.0, %v1943
    %1945 = vmatmul.f32.gmra.mxu0 %v1721
    %v1946 = vpop.f32.mrf.mxu0
    %v1947 = vadd.f32 0.0, %v1946
    %1948 = vmatmul.f32.gmra.mxu0 %v1724
    %v1949 = vpop.f32.mrf.mxu0
    %v1950 = vadd.f32 0.0, %v1949
    %1951 = vmatmul.f32.gmra.mxu0 %v1727
    %v1952 = vpop.f32.mrf.mxu0
    %v1953 = vadd.f32 0.0, %v1952
    %1954 = vmatmul.f32.gmra.mxu0 %v1730
    %v1955 = vpop.f32.mrf.mxu0
    %v1956 = vadd.f32 0.0, %v1955
    %1957 = vdwg.mxu0
    %v1958 = vlaneseq
    %v1959 = vshrl.u32 %v1958, 7
    %v1960 = vadd.s32 %v1959, 8
    %v1961 = vadd.s32 %v1959, 16
    %v1962 = vadd.s32 %v1959, 24
    %v1963 = vadd.s32 %v1959, 32
    %v1964 = vadd.s32 %v1959, 40
    %v1965 = vadd.s32 %v1959, 48
    %v1966 = vadd.s32 %v1959, 56
    %v1967 = vadd.s32 %v1959, 64
    %v1968 = vadd.s32 %v1959, 72
    %v1969 = vadd.s32 %v1959, 80
    %v1970 = vadd.s32 %v1959, 88
    %v1971 = vadd.s32 %v1959, 96
    %v1972 = vadd.s32 %v1959, 104
    %v1973 = vadd.s32 %v1959, 112
    %v1974 = vadd.s32 %v1959, 120
    %vm1975 = vcmp.eq.s32.totalorder %v1959, %v943
    %vm1976 = vcmp.eq.s32.totalorder %v1960, %v943
    %vm1977 = vcmp.eq.s32.totalorder %v1961, %v943
    %vm1978 = vcmp.eq.s32.totalorder %v1962, %v943
    %vm1979 = vcmp.eq.s32.totalorder %v1963, %v943
    %vm1980 = vcmp.eq.s32.totalorder %v1964, %v943
    %vm1981 = vcmp.eq.s32.totalorder %v1965, %v943
    %vm1982 = vcmp.eq.s32.totalorder %v1966, %v943
    %vm1983 = vcmp.eq.s32.totalorder %v1967, %v943
    %vm1984 = vcmp.eq.s32.totalorder %v1968, %v943
    %vm1985 = vcmp.eq.s32.totalorder %v1969, %v943
    %vm1986 = vcmp.eq.s32.totalorder %v1970, %v943
    %vm1987 = vcmp.eq.s32.totalorder %v1971, %v943
    %vm1988 = vcmp.eq.s32.totalorder %v1972, %v943
    %vm1989 = vcmp.eq.s32.totalorder %v1973, %v943
    %vm1990 = vcmp.eq.s32.totalorder %v1974, %v943
    %v1991 = vsel %vm1975, 1, 0
    %v1992 = vsel %vm1976, 1, 0
    %v1993 = vsel %vm1977, 1, 0
    %v1994 = vsel %vm1978, 1, 0
    %v1995 = vsel %vm1979, 1, 0
    %v1996 = vsel %vm1980, 1, 0
    %v1997 = vsel %vm1981, 1, 0
    %v1998 = vsel %vm1982, 1, 0
    %v1999 = vsel %vm1983, 1, 0
    %v2000 = vsel %vm1984, 1, 0
    %v2001 = vsel %vm1985, 1, 0
    %v2002 = vsel %vm1986, 1, 0
    %v2003 = vsel %vm1987, 1, 0
    %v2004 = vsel %vm1988, 1, 0
    %v2005 = vsel %vm1989, 1, 0
    %v2006 = vsel %vm1990, 1, 0
    %v2007 = vcvt.s32.f32 %v1991
    %v2008 = vcvt.s32.f32 %v1992
    %v2009 = vcvt.s32.f32 %v1993
    %v2010 = vcvt.s32.f32 %v1994
    %v2011 = vcvt.s32.f32 %v1995
    %v2012 = vcvt.s32.f32 %v1996
    %v2013 = vcvt.s32.f32 %v1997
    %v2014 = vcvt.s32.f32 %v1998
    %v2015 = vcvt.s32.f32 %v1999
    %v2016 = vcvt.s32.f32 %v2000
    %v2017 = vcvt.s32.f32 %v2001
    %v2018 = vcvt.s32.f32 %v2002
    %v2019 = vcvt.s32.f32 %v2003
    %v2020 = vcvt.s32.f32 %v2004
    %v2021 = vcvt.s32.f32 %v2005
    %v2022 = vcvt.s32.f32 %v2006
    %v2023 = vmul.f32 %v1798, %v2007
    %v2024 = vmul.f32 %v1801, %v2008
    %v2025 = vmul.f32 %v1804, %v2009
    %v2026 = vmul.f32 %v1807, %v2010
    %v2027 = vmul.f32 %v1810, %v2011
    %v2028 = vmul.f32 %v1813, %v2012
    %v2029 = vmul.f32 %v1816, %v2013
    %v2030 = vmul.f32 %v1819, %v2014
    %v2031 = vmul.f32 %v1822, %v2015
    %v2032 = vmul.f32 %v1825, %v2016
    %v2033 = vmul.f32 %v1828, %v2017
    %v2034 = vmul.f32 %v1831, %v2018
    %v2035 = vmul.f32 %v1834, %v2019
    %v2036 = vmul.f32 %v1837, %v2020
    %v2037 = vmul.f32 %v1840, %v2021
    %v2038 = vmul.f32 %v1843, %v2022
    %v2039 = vadd.f32 %v2023, %v2024
    %v2040 = vadd.f32 %v2039, %v2025
    %v2041 = vadd.f32 %v2040, %v2026
    %v2042 = vadd.f32 %v2041, %v2027
    %v2043 = vadd.f32 %v2042, %v2028
    %v2044 = vadd.f32 %v2043, %v2029
    %v2045 = vadd.f32 %v2044, %v2030
    %v2046 = vadd.f32 %v2045, %v2031
    %v2047 = vadd.f32 %v2046, %v2032
    %v2048 = vadd.f32 %v2047, %v2033
    %v2049 = vadd.f32 %v2048, %v2034
    %v2050 = vadd.f32 %v2049, %v2035
    %v2051 = vadd.f32 %v2050, %v2036
    %v2052 = vadd.f32 %v2051, %v2037
    %v2053 = vadd.f32 %v2052, %v2038
    %v2054 = vrot.slane %v2053, 4
    %v2055 = vadd.f32 %v2053, %v2054
    %v2056 = vrot.slane %v2055, 2
    %v2057 = vadd.f32 %v2055, %v2056
    %v2058 = vrot.slane %v2057, 1
    %v2059 = vadd.f32 %v2057, %v2058
    %2060 = vst [vmem:[#allocation2] sm:$0x1] %v2059
    %v2061 = vmul.f32 %v1911, %v2007
    %v2062 = vmul.f32 %v1914, %v2008
    %v2063 = vmul.f32 %v1917, %v2009
    %v2064 = vmul.f32 %v1920, %v2010
    %v2065 = vmul.f32 %v1923, %v2011
    %v2066 = vmul.f32 %v1926, %v2012
    %v2067 = vmul.f32 %v1929, %v2013
    %v2068 = vmul.f32 %v1932, %v2014
    %v2069 = vmul.f32 %v1935, %v2015
    %v2070 = vmul.f32 %v1938, %v2016
    %v2071 = vmul.f32 %v1941, %v2017
    %v2072 = vmul.f32 %v1944, %v2018
    %v2073 = vmul.f32 %v1947, %v2019
    %v2074 = vmul.f32 %v1950, %v2020
    %v2075 = vmul.f32 %v1953, %v2021
    %v2076 = vmul.f32 %v1956, %v2022
    %v2077 = vadd.f32 %v2061, %v2062
    %v2078 = vadd.f32 %v2077, %v2063
    %v2079 = vadd.f32 %v2078, %v2064
    %v2080 = vadd.f32 %v2079, %v2065
    %v2081 = vadd.f32 %v2080, %v2066
    %v2082 = vadd.f32 %v2081, %v2067
    %v2083 = vadd.f32 %v2082, %v2068
    %v2084 = vadd.f32 %v2083, %v2069
    %v2085 = vadd.f32 %v2084, %v2070
    %v2086 = vadd.f32 %v2085, %v2071
    %v2087 = vadd.f32 %v2086, %v2072
    %v2088 = vadd.f32 %v2087, %v2073
    %v2089 = vadd.f32 %v2088, %v2074
    %v2090 = vadd.f32 %v2089, %v2075
    %v2091 = vadd.f32 %v2090, %v2076
    %v2092 = vrot.slane %v2091, 4
    %v2093 = vadd.f32 %v2091, %v2092
    %v2094 = vrot.slane %v2093, 2
    %v2095 = vadd.f32 %v2093, %v2094
    %v2096 = vrot.slane %v2095, 1
    %v2097 = vadd.f32 %v2095, %v2096
    %2098 = vst [vmem:[#allocation2 + $0x1] sm:$0x1] %v2097
    // Predicated region
    $region98: #{tpu_custom_call.1} parent=1 // pred_check
      _
    $region99: #{tpu_custom_call.1} parent=1 // pred_check_branch
      %2100 = sbr.rel (0) target = $region101
    $region100: #{tpu_custom_call.1} parent=1 // pred_region
      %2102 = vsyncadd [#allocation3], 0
      %s2104 = sshll.u32 [#allocation2], 4
      %s2105 = int_to_ptr.vmem [resolvable:$true] %s2104
      %s2106 = sshll.u32 %s24, 4
      %s2107 = int_to_ptr.hbm [resolvable:$true] %s2106
      %2109 = dma.vmem_to_hbm [thread:$0]  %s2105, 32, %s2107, [#allocation3]
    $region101: #{tpu_custom_call.1} parent=1 // pred_fallthru
      _
    // Predicated region
    $region102: #{tpu_custom_call.1} parent=1 // pred_check
      _
    $region103: #{tpu_custom_call.1} parent=1 // pred_check_branch
      %2111 = sbr.rel (0) target = $region105
    $region104: #{tpu_custom_call.1} parent=1 // pred_region
      %2113 = dma.done [#allocation3], 32
    $region105: #{tpu_custom_call.1} parent=1 // pred_fallthru
      _
    %2114 = vsyncpa [#allocation3], 1

</llo_original>
